<compile_context>
chip_gen: v7x
topology: tpu7x:2x2x1
jax: 0.10.0
libtpu: 0.0.40
codegen_flags: <defaults>
</compile_context>

<pallas_src>
import functools

import numpy as np
import jax
import jax.numpy as jnp
from jax.experimental import pallas as pl
from jax.experimental.pallas import tpu as pltpu

BN_EPS = 1e-5
LANES = 128


def _pick_tile(n, target):
    """Largest tile <= target that divides n; full extent if n is small."""
    if n <= target:
        return n
    t = (target // LANES) * LANES
    while t >= LANES:
        if n % t == 0:
            return t
        t -= LANES
    raise ValueError(
        f"N={n}: tiled node dimension must be a multiple of {LANES} "
        f"(or <= {target}); pad the graph batch.")


# --------------------------- kernel bodies ---------------------------------

def _linear_stats_kernel(x_ref, w_ref, b_ref, pre_ref, stats_ref):
    """pre = x @ W + b for one row tile; emit per-tile (sum, sum of squares)."""
    pre = jnp.dot(x_ref[...], w_ref[...],
                  preferred_element_type=jnp.float32) + b_ref[...]
    pre_ref[...] = pre
    s = jnp.sum(pre, axis=0, keepdims=True)
    ss = jnp.sum(pre * pre, axis=0, keepdims=True)
    stats_ref[0] = jnp.concatenate([s, ss], axis=0)


def _bn_relu_head_kernel(pre_ref, stats_ref, g_ref, be_ref, wz_ref, bz_ref,
                         h_ref, zcat_ref, *, inv_n):
    """h = ReLU(BN(pre)); zcat = h @ [Wl0 | W1] + [bl0 | b1]; h stored in bf16."""
    mean = stats_ref[0:1, :] * inv_n
    var = jnp.maximum(stats_ref[1:2, :] * inv_n - mean * mean, 0.0)
    h = jnp.maximum((pre_ref[...] - mean) * jax.lax.rsqrt(var + BN_EPS)
                    * g_ref[...] + be_ref[...], 0.0)
    h_ref[...] = h.astype(h_ref.dtype)                      # bf16 feed for A @ h
    zcat_ref[...] = jnp.dot(h, wz_ref[...],
                            preferred_element_type=jnp.float32) + bz_ref[...]


def _gin_aggregate_kernel(a_ref, h_ref, hw1_ref, w1_ref, pre1_ref, stats_ref,
                          acc_ref, *, n_k):
    """acc = A @ h (bf16 inputs, f32 accumulation, reduction over column tiles).
    On the last column tile: pre1 = (h @ W1 + b1) + acc @ W1
                                  == (h + A @ h) @ W1 + b1, plus BN statistics."""
    k = pl.program_id(1)

    @pl.when(k == 0)
    def _():
        acc_ref[...] = jnp.zeros_like(acc_ref)

    acc_ref[...] += jnp.dot(a_ref[...], h_ref[...],
                            preferred_element_type=jnp.float32)

    @pl.when(k == n_k - 1)
    def _():
        pre1 = hw1_ref[...] + jnp.dot(acc_ref[...], w1_ref[...],
                                      preferred_element_type=jnp.float32)
        pre1_ref[...] = pre1
        s = jnp.sum(pre1, axis=0, keepdims=True)
        ss = jnp.sum(pre1 * pre1, axis=0, keepdims=True)
        stats_ref[0] = jnp.concatenate([s, ss], axis=0)


def _bn_relu_head_pool_kernel(pre_ref, stats_ref, g_ref, be_ref, wl_ref, bl_ref,
                              z0_ref, mask_ref,
                              zsum_ref, xout_ref, p0_ref, p1_ref, *, inv_n):
    """h2 = ReLU(BN(pre1)); z1 = h2 @ Wl1 + bl1; Z = z0 + z1; x_out = h2;
    per-row-tile masked per-graph max of z0 and z1 (vectorized over graphs)."""
    mean = stats_ref[0:1, :] * inv_n
    var = jnp.maximum(stats_ref[1:2, :] * inv_n - mean * mean, 0.0)
    h2 = jnp.maximum((pre_ref[...] - mean) * jax.lax.rsqrt(var + BN_EPS)
                     * g_ref[...] + be_ref[...], 0.0)
    xout_ref[...] = h2
    z1 = jnp.dot(h2, wl_ref[...], preferred_element_type=jnp.float32) + bl_ref[...]
    z0 = z0_ref[...]
    zsum_ref[...] = z0 + z1
    # additive mask: 0 for graph members, -1e30 for non-members / padded graphs
    neg = (mask_ref[...] - 1.0) * jnp.float32(1e30)          # [Bp, tm]
    p0_ref[0] = jnp.max(z0[None, :, :] + neg[:, :, None], axis=1)
    p1_ref[0] = jnp.max(z1[None, :, :] + neg[:, :, None], axis=1)


# ------------------------------ wrapper -------------------------------------

def gnn_forward(x, A, mask, params, *, row_tile=512, col_tile=512):
    N, F = x.shape
    B = mask.shape[0]
    H1 = params["w1"].shape[1]
    T = params["wl0"].shape[1]
    L = LANES
    f32 = jnp.float32

    tm = _pick_tile(N, row_tile)
    tk = _pick_tile(N, col_tile)
    n_i = N // tm
    n_k = N // tk
    Bp = max(8, -(-B // 8) * 8)
    inv_n = 1.0 / N

    def pad2(a, rows, cols):
        a = jnp.asarray(a, f32)
        return jnp.zeros((rows, cols), f32).at[: a.shape[0], : a.shape[1]].set(a)

    # lane-dense (128-wide) parameter slabs
    w0p, b0p = pad2(params["w0"], F, L), pad2(params["b0"], 1, L)
    g0p, be0p = pad2(params["g0"], 1, L), pad2(params["be0"], 1, L)
    # fused layer-0 heads: h @ [Wl0 | W1]  (+ [bl0 | b1])
    wz0p = jnp.concatenate([pad2(params["wl0"], L, L), pad2(params["w1"], L, L)], axis=1)
    bz0p = jnp.concatenate([pad2(params["bl0"], 1, L), pad2(params["b1"], 1, L)], axis=1)
    w1p = pad2(params["w1"], L, L)
    g1p, be1p = pad2(params["g1"], 1, L), pad2(params["be1"], 1, L)
    wl1p, bl1p = pad2(params["wl1"], L, L), pad2(params["bl1"], 1, L)

    A_bf = A.astype(jnp.bfloat16)            # integer edge counts: exact in bf16
    mask_p = jnp.zeros((Bp, N), f32).at[:B, :].set(mask.astype(f32))
    x = x.astype(f32)

    # ---- stage 1: pre0 = x @ W0 + b0, streaming BN0 statistics ----
    pre0, stats0p = pl.pallas_call(
        _linear_stats_kernel,
        grid=(n_i,),
        in_specs=[pl.BlockSpec((tm, F), lambda i: (i, 0)),
                  pl.BlockSpec((F, L), lambda i: (0, 0)),
                  pl.BlockSpec((1, L), lambda i: (0, 0))],
        out_specs=(pl.BlockSpec((tm, L), lambda i: (i, 0)),
                   pl.BlockSpec((1, 2, L), lambda i: (i, 0, 0))),
        out_shape=(jax.ShapeDtypeStruct((N, L), f32),
                   jax.ShapeDtypeStruct((n_i, 2, L), f32)),
        compiler_params=pltpu.CompilerParams(dimension_semantics=("parallel",)),
    )(x, w0p, b0p)
    stats0 = jnp.sum(stats0p, axis=0)                         # [2, L]: sum, sumsq

    # ---- stage 2: h = ReLU(BN0(pre0)); fused heads h @ [Wl0 | W1] ----
    h_bf, zcat = pl.pallas_call(
        functools.partial(_bn_relu_head_kernel, inv_n=inv_n),
        grid=(n_i,),
        in_specs=[pl.BlockSpec((tm, L), lambda i: (i, 0)),      # pre0
                  pl.BlockSpec((2, L), lambda i: (0, 0)),        # BN0 stats
                  pl.BlockSpec((1, L), lambda i: (0, 0)),        # gamma0
                  pl.BlockSpec((1, L), lambda i: (0, 0)),        # beta0
                  pl.BlockSpec((L, 2 * L), lambda i: (0, 0)),    # [Wl0 | W1]
                  pl.BlockSpec((1, 2 * L), lambda i: (0, 0))],   # [bl0 | b1]
        out_specs=(pl.BlockSpec((tm, L), lambda i: (i, 0)),
                   pl.BlockSpec((tm, 2 * L), lambda i: (i, 0))),
        out_shape=(jax.ShapeDtypeStruct((N, L), jnp.bfloat16),   # h (bf16)
                   jax.ShapeDtypeStruct((N, 2 * L), f32)),       # [z0 | h@W1+b1]
        compiler_params=pltpu.CompilerParams(dimension_semantics=("parallel",)),
    )(pre0, stats0, g0p, be0p, wz0p, bz0p)

    # ---- stage 3: tiled A @ h (bf16) + layer-1 pre-activation + BN1 stats ----
    cost = pl.CostEstimate(
        flops=2 * N * N * L + 2 * N * L * L,
        transcendentals=0,
        bytes_accessed=N * N * 2 + n_i * N * L * 2 + 2 * N * L * 4,
    )
    pre1, stats1p = pl.pallas_call(
        functools.partial(_gin_aggregate_kernel, n_k=n_k),
        grid=(n_i, n_k),
        in_specs=[pl.BlockSpec((tm, tk), lambda i, k: (i, k)),   # A tile (bf16)
                  pl.BlockSpec((tk, L), lambda i, k: (k, 0)),    # h tile (bf16)
                  pl.BlockSpec((tm, L), lambda i, k: (i, 1)),    # h@W1+b1 (lane blk 1)
                  pl.BlockSpec((L, L), lambda i, k: (0, 0))],    # W1
        out_specs=(pl.BlockSpec((tm, L), lambda i, k: (i, 0)),
                   pl.BlockSpec((1, 2, L), lambda i, k: (i, 0, 0))),
        out_shape=(jax.ShapeDtypeStruct((N, L), f32),            # (h + A@h)@W1 + b1
                   jax.ShapeDtypeStruct((n_i, 2, L), f32)),
        scratch_shapes=[pltpu.VMEM((tm, L), jnp.float32)],
        compiler_params=pltpu.CompilerParams(
            dimension_semantics=("parallel", "arbitrary"),
            vmem_limit_bytes=32 * 1024 * 1024),
        cost_estimate=cost,
    )(A_bf, h_bf, zcat, w1p)
    stats1 = jnp.sum(stats1p, axis=0)

    # ---- stage 4: h2 = ReLU(BN1(pre1)); z1; Z; x_out; masked max-pool ----
    zsum, xoutp, pool0p, pool1p = pl.pallas_call(
        functools.partial(_bn_relu_head_pool_kernel, inv_n=inv_n),
        grid=(n_i,),
        in_specs=[pl.BlockSpec((tm, L), lambda i: (i, 0)),       # pre1
                  pl.BlockSpec((2, L), lambda i: (0, 0)),         # BN1 stats
                  pl.BlockSpec((1, L), lambda i: (0, 0)),         # gamma1
                  pl.BlockSpec((1, L), lambda i: (0, 0)),         # beta1
                  pl.BlockSpec((L, L), lambda i: (0, 0)),         # Wl1
                  pl.BlockSpec((1, L), lambda i: (0, 0)),         # bl1
                  pl.BlockSpec((tm, L), lambda i: (i, 0)),        # z0 (lane blk 0)
                  pl.BlockSpec((Bp, tm), lambda i: (0, i))],      # graph mask
        out_specs=(pl.BlockSpec((tm, L), lambda i: (i, 0)),
                   pl.BlockSpec((tm, L), lambda i: (i, 0)),
                   pl.BlockSpec((1, Bp, L), lambda i: (i, 0, 0)),
                   pl.BlockSpec((1, Bp, L), lambda i: (i, 0, 0))),
        out_shape=(jax.ShapeDtypeStruct((N, L), f32),             # Z = z0 + z1
                   jax.ShapeDtypeStruct((N, L), f32),             # x_out = h2
                   jax.ShapeDtypeStruct((n_i, Bp, L), f32),       # tile max of z0
                   jax.ShapeDtypeStruct((n_i, Bp, L), f32)),      # tile max of z1
        compiler_params=pltpu.CompilerParams(dimension_semantics=("parallel",)),
    )(pre1, stats1, g1p, be1p, wl1p, bl1p, zcat, mask_p)

    out = jnp.max(pool0p, axis=0)[:B, :T] + jnp.max(pool1p, axis=0)[:B, :T]
    Z = zsum[:, :T]
    x_out = xoutp[:, :H1]
    return out, Z, x_out


# ------------------------------ reference -----------------------------------

def gnn_reference(x, A, mask, p):
    """Plain-JAX mirror of the torch forward (training-mode BN).  The GIN
    aggregation A @ h uses the same bf16 cast as the kernel (A's integer edge
    counts are bf16-exact); vs a pure-f32 torch run this perturbs results at
    roughly the 1e-2 level."""
    def bn_relu(h, g, be):
        mu = jnp.mean(h, axis=0, keepdims=True)
        var = jnp.mean((h - mu) ** 2, axis=0, keepdims=True)
        return jnp.maximum((h - mu) / jnp.sqrt(var + BN_EPS) * g + be, 0.0)

    def maxpool(z):
        neg = jnp.float32(-1e30)
        return jnp.max(jnp.where(mask[:, :, None] > 0.5, z[None], neg), axis=1)

    h = bn_relu(x @ p["w0"] + p["b0"], p["g0"], p["be0"])
    z0 = h @ p["wl0"] + p["bl0"]
    ah = jnp.dot(A.astype(jnp.bfloat16), h.astype(jnp.bfloat16),
                 preferred_element_type=jnp.float32)
    h2 = bn_relu((h + ah) @ p["w1"] + p["b1"], p["g1"], p["be1"])
    z1 = h2 @ p["wl1"] + p["bl1"]
    return maxpool(z0) + maxpool(z1), z0 + z1, h2


if __name__ == "__main__":
    # ---- small deterministic problem ----
    B = 2                    # graphs
    nodes_per_graph = 8
    N = B * nodes_per_graph
    F = 8                    # dim_features
    H0, H1 = 6, 6            # layers=[6, 6]
    T = 4                    # dim_target

    key = jax.random.PRNGKey(0)
    ks = jax.random.split(key, 12)

    x = jax.random.normal(ks[0], (N, F), dtype=jnp.float32)

    # batch vector and ring edges (both directions) within each graph
    batch = np.repeat(np.arange(B), nodes_per_graph)
    edges = []
    for g in range(B):
        base = g * nodes_per_graph
        for i in range(nodes_per_graph):
            a = base + i
            b = base + (i + 1) % nodes_per_graph
            edges.append((a, b))
            edges.append((b, a))
    edge_index = np.array(edges, dtype=np.int32).T            # [2, E]
    src, dst = edge_index[0], edge_index[1]

    # dense adjacency: A[dst, src] += 1 (messages flow src -> dst, sum aggr)
    A = jnp.zeros((N, N), jnp.float32).at[dst, src].add(1.0)
    # graph-membership mask [B, N]
    mask = (jnp.asarray(batch)[None, :] == jnp.arange(B)[:, None]).astype(jnp.float32)

    params = {
        # first_h: Linear(F, H0) + BN(H0)
        "w0":  jax.random.normal(ks[1], (F, H0), jnp.float32) * 0.3,
        "b0":  jax.random.normal(ks[2], (1, H0), jnp.float32) * 0.1,
        "g0":  1.0 + 0.1 * jax.random.normal(ks[3], (1, H0), jnp.float32),
        "be0": 0.1 * jax.random.normal(ks[4], (1, H0), jnp.float32),
        # linears[0]: Linear(H0, T)
        "wl0": jax.random.normal(ks[5], (H0, T), jnp.float32) * 0.3,
        "bl0": jax.random.normal(ks[6], (1, T), jnp.float32) * 0.1,
        # GINConv nn: Linear(H0, H1) + BN(H1)
        "w1":  jax.random.normal(ks[7], (H0, H1), jnp.float32) * 0.3,
        "b1":  jax.random.normal(ks[8], (1, H1), jnp.float32) * 0.1,
        "g1":  1.0 + 0.1 * jax.random.normal(ks[9], (1, H1), jnp.float32),
        "be1": 0.1 * jax.random.normal(ks[10], (1, H1), jnp.float32),
        # linears[1]: Linear(H1, T)
        "wl1": jax.random.normal(ks[11], (H1, T), jnp.float32) * 0.3,
        "bl1": jnp.zeros((1, T), jnp.float32),
    }

    fwd = jax.jit(gnn_forward)
    out, Z, x_out = fwd(x, A, mask, params)
    jax.block_until_ready((out, Z, x_out))

    out_r, Z_r, x_r = gnn_reference(x, A, mask, params)
    np.testing.assert_allclose(np.asarray(out), np.asarray(out_r), rtol=1e-2, atol=1e-2)
    np.testing.assert_allclose(np.asarray(Z), np.asarray(Z_r), rtol=1e-2, atol=1e-2)
    np.testing.assert_allclose(np.asarray(x_out), np.asarray(x_r), rtol=1e-2, atol=1e-2)

    print("KERNEL_OK")
</pallas_src>

<mosaic_0001>
module attributes {stable_mosaic.version = 11 : i64} {
  func.func @_bn_relu_head_pool_kernel(%arg0: i32, %arg1: memref<16x128xf32, #tpu.memory_space<vmem>>, %arg2: memref<2x128xf32, #tpu.memory_space<vmem>>, %arg3: memref<1x128xf32, #tpu.memory_space<vmem>>, %arg4: memref<1x128xf32, #tpu.memory_space<vmem>>, %arg5: memref<128x128xf32, #tpu.memory_space<vmem>>, %arg6: memref<1x128xf32, #tpu.memory_space<vmem>>, %arg7: memref<16x128xf32, #tpu.memory_space<vmem>>, %arg8: memref<8x16xf32, #tpu.memory_space<vmem>>, %arg9: memref<16x128xf32, #tpu.memory_space<vmem>>, %arg10: memref<16x128xf32, #tpu.memory_space<vmem>>, %arg11: memref<1x8x128xf32, #tpu.memory_space<vmem>>, %arg12: memref<1x8x128xf32, #tpu.memory_space<vmem>>) attributes {dimension_semantics = [#tpu.dimension_semantics<parallel>], iteration_bounds = array<i64: 1>, scalar_prefetch = 0 : i64, scratch_operands = 0 : i64, tpu.core_type = #tpu.core_type<tc>, window_params = [{transform_indices = @transform_0, window_bounds = array<i64: 16, 128>}, {pipeline_mode = #tpu.pipeline_mode<synchronous>, transform_indices = @transform_1, window_bounds = array<i64: 2, 128>}, {pipeline_mode = #tpu.pipeline_mode<synchronous>, transform_indices = @transform_2, window_bounds = array<i64: 1, 128>}, {pipeline_mode = #tpu.pipeline_mode<synchronous>, transform_indices = @transform_3, window_bounds = array<i64: 1, 128>}, {pipeline_mode = #tpu.pipeline_mode<synchronous>, transform_indices = @transform_4, window_bounds = array<i64: 128, 128>}, {pipeline_mode = #tpu.pipeline_mode<synchronous>, transform_indices = @transform_5, window_bounds = array<i64: 1, 128>}, {transform_indices = @transform_6, window_bounds = array<i64: 16, 128>}, {transform_indices = @transform_7, window_bounds = array<i64: 8, 16>}, {transform_indices = @transform_8, window_bounds = array<i64: 16, 128>}, {transform_indices = @transform_9, window_bounds = array<i64: 16, 128>}, {transform_indices = @transform_10, window_bounds = array<i64: 1, 8, 128>}, {transform_indices = @transform_11, window_bounds = array<i64: 1, 8, 128>}]} {
    %c0 = arith.constant 0 : index
    %c0_0 = arith.constant 0 : index
    %0 = vector.load %arg2[%c0, %c0_0] : memref<2x128xf32, #tpu.memory_space<vmem>>, vector<1x128xf32>
    %cst = arith.constant 6.250000e-02 : f32
    %1 = vector.broadcast %cst : f32 to vector<1x128xf32>
    %2 = arith.mulf %0, %1 : vector<1x128xf32>
    %c1 = arith.constant 1 : index
    %c0_1 = arith.constant 0 : index
    %3 = vector.load %arg2[%c1, %c0_1] : memref<2x128xf32, #tpu.memory_space<vmem>>, vector<1x128xf32>
    %cst_2 = arith.constant 6.250000e-02 : f32
    %4 = vector.broadcast %cst_2 : f32 to vector<1x128xf32>
    %5 = arith.mulf %3, %4 : vector<1x128xf32>
    %6 = arith.mulf %2, %2 : vector<1x128xf32>
    %7 = arith.subf %5, %6 : vector<1x128xf32>
    %cst_3 = arith.constant 0.000000e+00 : f32
    %8 = vector.broadcast %cst_3 : f32 to vector<1x128xf32>
    %9 = arith.maximumf %7, %8 : vector<1x128xf32>
    %c0_4 = arith.constant 0 : index
    %c0_5 = arith.constant 0 : index
    %10 = vector.load %arg1[%c0_4, %c0_5] : memref<16x128xf32, #tpu.memory_space<vmem>>, vector<16x128xf32>
    %11 = vector.broadcast %2 : vector<1x128xf32> to vector<16x128xf32>
    %12 = arith.subf %10, %11 : vector<16x128xf32>
    %cst_6 = arith.constant 9.99999974E-6 : f32
    %13 = vector.broadcast %cst_6 : f32 to vector<1x128xf32>
    %14 = arith.addf %9, %13 : vector<1x128xf32>
    %15 = math.rsqrt %14 : vector<1x128xf32>
    %16 = vector.broadcast %15 : vector<1x128xf32> to vector<16x128xf32>
    %17 = arith.mulf %12, %16 : vector<16x128xf32>
    %c0_7 = arith.constant 0 : index
    %c0_8 = arith.constant 0 : index
    %18 = vector.load %arg3[%c0_7, %c0_8] : memref<1x128xf32, #tpu.memory_space<vmem>>, vector<1x128xf32>
    %19 = vector.broadcast %18 : vector<1x128xf32> to vector<16x128xf32>
    %20 = arith.mulf %17, %19 : vector<16x128xf32>
    %c0_9 = arith.constant 0 : index
    %c0_10 = arith.constant 0 : index
    %21 = vector.load %arg4[%c0_9, %c0_10] : memref<1x128xf32, #tpu.memory_space<vmem>>, vector<1x128xf32>
    %22 = vector.broadcast %21 : vector<1x128xf32> to vector<16x128xf32>
    %23 = arith.addf %20, %22 : vector<16x128xf32>
    %cst_11 = arith.constant 0.000000e+00 : f32
    %24 = vector.broadcast %cst_11 : f32 to vector<16x128xf32>
    %25 = arith.maximumf %23, %24 : vector<16x128xf32>
    %c0_12 = arith.constant 0 : index
    %c0_13 = arith.constant 0 : index
    %26 = vector.load %arg10[%c0_12, %c0_13] : memref<16x128xf32, #tpu.memory_space<vmem>>, vector<16x128xf32>
    tpu.vector_store %arg10[%c0_12, %c0_13], %25 {strides = array<i32>} : memref<16x128xf32, #tpu.memory_space<vmem>>, vector<16x128xf32>,
    %c0_14 = arith.constant 0 : index
    %c0_15 = arith.constant 0 : index
    %27 = vector.load %arg5[%c0_14, %c0_15] : memref<128x128xf32, #tpu.memory_space<vmem>>, vector<128x128xf32>
    %cst_16 = arith.constant dense<0.000000e+00> : vector<16x128xf32>
    %28 = tpu.matmul %25, %27, %cst_16 {dimension_numbers = #tpu.dot_dimension_numbers<[1], [0], [0], [1], [0, 0, 1, 1], [], []>} : vector<16x128xf32>, vector<128x128xf32>, vector<16x128xf32> -> vector<16x128xf32>
    %c0_17 = arith.constant 0 : index
    %c0_18 = arith.constant 0 : index
    %29 = vector.load %arg6[%c0_17, %c0_18] : memref<1x128xf32, #tpu.memory_space<vmem>>, vector<1x128xf32>
    %30 = vector.broadcast %29 : vector<1x128xf32> to vector<16x128xf32>
    %31 = arith.addf %28, %30 : vector<16x128xf32>
    %c0_19 = arith.constant 0 : index
    %c0_20 = arith.constant 0 : index
    %32 = vector.load %arg7[%c0_19, %c0_20] : memref<16x128xf32, #tpu.memory_space<vmem>>, vector<16x128xf32>
    %33 = arith.addf %32, %31 : vector<16x128xf32>
    %c0_21 = arith.constant 0 : index
    %c0_22 = arith.constant 0 : index
    %34 = vector.load %arg9[%c0_21, %c0_22] : memref<16x128xf32, #tpu.memory_space<vmem>>, vector<16x128xf32>
    tpu.vector_store %arg9[%c0_21, %c0_22], %33 {strides = array<i32>} : memref<16x128xf32, #tpu.memory_space<vmem>>, vector<16x128xf32>,
    %c0_23 = arith.constant 0 : index
    %c0_24 = arith.constant 0 : index
    %35 = vector.load %arg8[%c0_23, %c0_24] : memref<8x16xf32, #tpu.memory_space<vmem>>, vector<8x16xf32>
    %cst_25 = arith.constant 1.000000e+00 : f32
    %36 = vector.broadcast %cst_25 : f32 to vector<8x16xf32>
    %37 = arith.subf %35, %36 : vector<8x16xf32>
    %cst_26 = arith.constant 1.000000e+30 : f32
    %38 = vector.broadcast %cst_26 : f32 to vector<8x16xf32>
    %39 = arith.mulf %37, %38 : vector<8x16xf32>
    %40 = vector.shape_cast %32 : vector<16x128xf32> to vector<1x16x128xf32>
    %41 = vector.shape_cast %39 : vector<8x16xf32> to vector<8x16x1xf32>
    %42 = vector.broadcast %40 : vector<1x16x128xf32> to vector<8x16x128xf32>
    %43 = vector.broadcast %41 : vector<8x16x1xf32> to vector<8x16x128xf32>
    %44 = arith.addf %42, %43 : vector<8x16x128xf32>
    %cst_27 = arith.constant dense<0xFF800000> : vector<8x128xf32>
    %45 = vector.multi_reduction <maximumf>, %44, %cst_27 [1] : vector<8x16x128xf32> to vector<8x128xf32>
    %c0_28 = arith.constant 0 : index
    %c0_29 = arith.constant 0 : index
    %c0_30 = arith.constant 0 : index
    %46 = vector.load %arg11[%c0_28, %c0_29, %c0_30] : memref<1x8x128xf32, #tpu.memory_space<vmem>>, vector<1x8x128xf32>
    %47 = vector.shape_cast %46 : vector<1x8x128xf32> to vector<8x128xf32>
    %48 = vector.shape_cast %45 : vector<8x128xf32> to vector<1x8x128xf32>
    tpu.vector_store %arg11[%c0_28, %c0_29, %c0_30], %48 {strides = array<i32>} : memref<1x8x128xf32, #tpu.memory_space<vmem>>, vector<1x8x128xf32>,
    %49 = vector.shape_cast %31 : vector<16x128xf32> to vector<1x16x128xf32>
    %50 = vector.shape_cast %39 : vector<8x16xf32> to vector<8x16x1xf32>
    %51 = vector.broadcast %49 : vector<1x16x128xf32> to vector<8x16x128xf32>
    %52 = vector.broadcast %50 : vector<8x16x1xf32> to vector<8x16x128xf32>
    %53 = arith.addf %51, %52 : vector<8x16x128xf32>
    %cst_31 = arith.constant dense<0xFF800000> : vector<8x128xf32>
    %54 = vector.multi_reduction <maximumf>, %53, %cst_31 [1] : vector<8x16x128xf32> to vector<8x128xf32>
    %c0_32 = arith.constant 0 : index
    %c0_33 = arith.constant 0 : index
    %c0_34 = arith.constant 0 : index
    %55 = vector.load %arg12[%c0_32, %c0_33, %c0_34] : memref<1x8x128xf32, #tpu.memory_space<vmem>>, vector<1x8x128xf32>
    %56 = vector.shape_cast %55 : vector<1x8x128xf32> to vector<8x128xf32>
    %57 = vector.shape_cast %54 : vector<8x128xf32> to vector<1x8x128xf32>
    tpu.vector_store %arg12[%c0_32, %c0_33, %c0_34], %57 {strides = array<i32>} : memref<1x8x128xf32, #tpu.memory_space<vmem>>, vector<1x8x128xf32>,
    return
  }
  func.func @transform_0(%arg0: i32) -> (i32, i32) {
    %c0_i32 = arith.constant 0 : i32
    %c0_i32_0 = arith.constant 0 : i32
    return %arg0, %c0_i32 : i32, i32
  }
  func.func @transform_1(%arg0: i32) -> (i32, i32) {
    %c0_i32 = arith.constant 0 : i32
    %c0_i32_0 = arith.constant 0 : i32
    %c0_i32_1 = arith.constant 0 : i32
    return %c0_i32, %c0_i32_0 : i32, i32
  }
  func.func @transform_2(%arg0: i32) -> (i32, i32) {
    %c0_i32 = arith.constant 0 : i32
    %c0_i32_0 = arith.constant 0 : i32
    %c0_i32_1 = arith.constant 0 : i32
    return %c0_i32, %c0_i32_0 : i32, i32
  }
  func.func @transform_3(%arg0: i32) -> (i32, i32) {
    %c0_i32 = arith.constant 0 : i32
    %c0_i32_0 = arith.constant 0 : i32
    %c0_i32_1 = arith.constant 0 : i32
    return %c0_i32, %c0_i32_0 : i32, i32
  }
  func.func @transform_4(%arg0: i32) -> (i32, i32) {
    %c0_i32 = arith.constant 0 : i32
    %c0_i32_0 = arith.constant 0 : i32
    %c0_i32_1 = arith.constant 0 : i32
    return %c0_i32, %c0_i32_0 : i32, i32
  }
  func.func @transform_5(%arg0: i32) -> (i32, i32) {
    %c0_i32 = arith.constant 0 : i32
    %c0_i32_0 = arith.constant 0 : i32
    %c0_i32_1 = arith.constant 0 : i32
    return %c0_i32, %c0_i32_0 : i32, i32
  }
  func.func @transform_6(%arg0: i32) -> (i32, i32) {
    %c0_i32 = arith.constant 0 : i32
    %c0_i32_0 = arith.constant 0 : i32
    return %arg0, %c0_i32 : i32, i32
  }
  func.func @transform_7(%arg0: i32) -> (i32, i32) {
    %c0_i32 = arith.constant 0 : i32
    %c0_i32_0 = arith.constant 0 : i32
    return %c0_i32, %arg0 : i32, i32
  }
  func.func @transform_8(%arg0: i32) -> (i32, i32) {
    %c0_i32 = arith.constant 0 : i32
    %c0_i32_0 = arith.constant 0 : i32
    return %arg0, %c0_i32 : i32, i32
  }
  func.func @transform_9(%arg0: i32) -> (i32, i32) {
    %c0_i32 = arith.constant 0 : i32
    %c0_i32_0 = arith.constant 0 : i32
    return %arg0, %c0_i32 : i32, i32
  }
  func.func @transform_10(%arg0: i32) -> (i32, i32, i32) {
    %c0_i32 = arith.constant 0 : i32
    %c0_i32_0 = arith.constant 0 : i32
    %c0_i32_1 = arith.constant 0 : i32
    return %arg0, %c0_i32, %c0_i32_0 : i32, i32, i32
  }
  func.func @transform_11(%arg0: i32) -> (i32, i32, i32) {
    %c0_i32 = arith.constant 0 : i32
    %c0_i32_0 = arith.constant 0 : i32
    %c0_i32_1 = arith.constant 0 : i32
    return %arg0, %c0_i32, %c0_i32_0 : i32, i32, i32
  }
}

module attributes {stable_mosaic.version = 11 : i64} {
  func.func @_linear_stats_kernel(%arg0: i32, %arg1: memref<16x8xf32, #tpu.memory_space<vmem>>, %arg2: memref<8x128xf32, #tpu.memory_space<vmem>>, %arg3: memref<1x128xf32, #tpu.memory_space<vmem>>, %arg4: memref<16x128xf32, #tpu.memory_space<vmem>>, %arg5: memref<1x2x128xf32, #tpu.memory_space<vmem>>) attributes {dimension_semantics = [#tpu.dimension_semantics<parallel>], iteration_bounds = array<i64: 1>, scalar_prefetch = 0 : i64, scratch_operands = 0 : i64, tpu.core_type = #tpu.core_type<tc>, window_params = [{transform_indices = @transform_0, window_bounds = array<i64: 16, 8>}, {pipeline_mode = #tpu.pipeline_mode<synchronous>, transform_indices = @transform_1, window_bounds = array<i64: 8, 128>}, {pipeline_mode = #tpu.pipeline_mode<synchronous>, transform_indices = @transform_2, window_bounds = array<i64: 1, 128>}, {transform_indices = @transform_3, window_bounds = array<i64: 16, 128>}, {transform_indices = @transform_4, window_bounds = array<i64: 1, 2, 128>}]} {
    %c0 = arith.constant 0 : index
    %c0_0 = arith.constant 0 : index
    %0 = vector.load %arg1[%c0, %c0_0] : memref<16x8xf32, #tpu.memory_space<vmem>>, vector<16x8xf32>
    %c0_1 = arith.constant 0 : index
    %c0_2 = arith.constant 0 : index
    %1 = vector.load %arg2[%c0_1, %c0_2] : memref<8x128xf32, #tpu.memory_space<vmem>>, vector<8x128xf32>
    %cst = arith.constant dense<0.000000e+00> : vector<16x128xf32>
    %2 = tpu.matmul %0, %1, %cst {dimension_numbers = #tpu.dot_dimension_numbers<[1], [0], [0], [1], [0, 0, 1, 1], [], []>} : vector<16x8xf32>, vector<8x128xf32>, vector<16x128xf32> -> vector<16x128xf32>
    %c0_3 = arith.constant 0 : index
    %c0_4 = arith.constant 0 : index
    %3 = vector.load %arg3[%c0_3, %c0_4] : memref<1x128xf32, #tpu.memory_space<vmem>>, vector<1x128xf32>
    %4 = vector.broadcast %3 : vector<1x128xf32> to vector<16x128xf32>
    %5 = arith.addf %2, %4 : vector<16x128xf32>
    %c0_5 = arith.constant 0 : index
    %c0_6 = arith.constant 0 : index
    %6 = vector.load %arg4[%c0_5, %c0_6] : memref<16x128xf32, #tpu.memory_space<vmem>>, vector<16x128xf32>
    tpu.vector_store %arg4[%c0_5, %c0_6], %5 {strides = array<i32>} : memref<16x128xf32, #tpu.memory_space<vmem>>, vector<16x128xf32>,
    %cst_7 = arith.constant dense<0.000000e+00> : vector<128xf32>
    %7 = vector.multi_reduction <add>, %5, %cst_7 [0] : vector<16x128xf32> to vector<128xf32>
    %8 = vector.shape_cast %7 : vector<128xf32> to vector<1x128xf32>
    %9 = arith.mulf %5, %5 : vector<16x128xf32>
    %cst_8 = arith.constant dense<0.000000e+00> : vector<128xf32>
    %10 = vector.multi_reduction <add>, %9, %cst_8 [0] : vector<16x128xf32> to vector<128xf32>
    %11 = vector.shape_cast %10 : vector<128xf32> to vector<1x128xf32>
    %12 = tpu.concatenate %8, %11 in 0 : vector<1x128xf32>, vector<1x128xf32> -> vector<2x128xf32>
    %c0_9 = arith.constant 0 : index
    %c0_10 = arith.constant 0 : index
    %c0_11 = arith.constant 0 : index
    %13 = vector.load %arg5[%c0_9, %c0_10, %c0_11] : memref<1x2x128xf32, #tpu.memory_space<vmem>>, vector<1x2x128xf32>
    %14 = vector.shape_cast %13 : vector<1x2x128xf32> to vector<2x128xf32>
    %15 = vector.shape_cast %12 : vector<2x128xf32> to vector<1x2x128xf32>
    tpu.vector_store %arg5[%c0_9, %c0_10, %c0_11], %15 {strides = array<i32>} : memref<1x2x128xf32, #tpu.memory_space<vmem>>, vector<1x2x128xf32>,
    return
  }
  func.func @transform_0(%arg0: i32) -> (i32, i32) {
    %c0_i32 = arith.constant 0 : i32
    %c0_i32_0 = arith.constant 0 : i32
    return %arg0, %c0_i32 : i32, i32
  }
  func.func @transform_1(%arg0: i32) -> (i32, i32) {
    %c0_i32 = arith.constant 0 : i32
    %c0_i32_0 = arith.constant 0 : i32
    %c0_i32_1 = arith.constant 0 : i32
    return %c0_i32, %c0_i32_0 : i32, i32
  }
  func.func @transform_2(%arg0: i32) -> (i32, i32) {
    %c0_i32 = arith.constant 0 : i32
    %c0_i32_0 = arith.constant 0 : i32
    %c0_i32_1 = arith.constant 0 : i32
    return %c0_i32, %c0_i32_0 : i32, i32
  }
  func.func @transform_3(%arg0: i32) -> (i32, i32) {
    %c0_i32 = arith.constant 0 : i32
    %c0_i32_0 = arith.constant 0 : i32
    return %arg0, %c0_i32 : i32, i32
  }
  func.func @transform_4(%arg0: i32) -> (i32, i32, i32) {
    %c0_i32 = arith.constant 0 : i32
    %c0_i32_0 = arith.constant 0 : i32
    %c0_i32_1 = arith.constant 0 : i32
    return %arg0, %c0_i32, %c0_i32_0 : i32, i32, i32
  }
}

module attributes {stable_mosaic.version = 11 : i64} {
  func.func @_bn_relu_head_kernel(%arg0: i32, %arg1: memref<16x128xf32, #tpu.memory_space<vmem>>, %arg2: memref<2x128xf32, #tpu.memory_space<vmem>>, %arg3: memref<1x128xf32, #tpu.memory_space<vmem>>, %arg4: memref<1x128xf32, #tpu.memory_space<vmem>>, %arg5: memref<128x256xf32, #tpu.memory_space<vmem>>, %arg6: memref<1x256xf32, #tpu.memory_space<vmem>>, %arg7: memref<16x128xbf16, #tpu.memory_space<vmem>>, %arg8: memref<16x256xf32, #tpu.memory_space<vmem>>) attributes {dimension_semantics = [#tpu.dimension_semantics<parallel>], iteration_bounds = array<i64: 1>, scalar_prefetch = 0 : i64, scratch_operands = 0 : i64, tpu.core_type = #tpu.core_type<tc>, window_params = [{transform_indices = @transform_0, window_bounds = array<i64: 16, 128>}, {pipeline_mode = #tpu.pipeline_mode<synchronous>, transform_indices = @transform_1, window_bounds = array<i64: 2, 128>}, {pipeline_mode = #tpu.pipeline_mode<synchronous>, transform_indices = @transform_2, window_bounds = array<i64: 1, 128>}, {pipeline_mode = #tpu.pipeline_mode<synchronous>, transform_indices = @transform_3, window_bounds = array<i64: 1, 128>}, {pipeline_mode = #tpu.pipeline_mode<synchronous>, transform_indices = @transform_4, window_bounds = array<i64: 128, 256>}, {pipeline_mode = #tpu.pipeline_mode<synchronous>, transform_indices = @transform_5, window_bounds = array<i64: 1, 256>}, {transform_indices = @transform_6, window_bounds = array<i64: 16, 128>}, {transform_indices = @transform_7, window_bounds = array<i64: 16, 256>}]} {
    %c0 = arith.constant 0 : index
    %c0_0 = arith.constant 0 : index
    %0 = vector.load %arg2[%c0, %c0_0] : memref<2x128xf32, #tpu.memory_space<vmem>>, vector<1x128xf32>
    %cst = arith.constant 6.250000e-02 : f32
    %1 = vector.broadcast %cst : f32 to vector<1x128xf32>
    %2 = arith.mulf %0, %1 : vector<1x128xf32>
    %c1 = arith.constant 1 : index
    %c0_1 = arith.constant 0 : index
    %3 = vector.load %arg2[%c1, %c0_1] : memref<2x128xf32, #tpu.memory_space<vmem>>, vector<1x128xf32>
    %cst_2 = arith.constant 6.250000e-02 : f32
    %4 = vector.broadcast %cst_2 : f32 to vector<1x128xf32>
    %5 = arith.mulf %3, %4 : vector<1x128xf32>
    %6 = arith.mulf %2, %2 : vector<1x128xf32>
    %7 = arith.subf %5, %6 : vector<1x128xf32>
    %cst_3 = arith.constant 0.000000e+00 : f32
    %8 = vector.broadcast %cst_3 : f32 to vector<1x128xf32>
    %9 = arith.maximumf %7, %8 : vector<1x128xf32>
    %c0_4 = arith.constant 0 : index
    %c0_5 = arith.constant 0 : index
    %10 = vector.load %arg1[%c0_4, %c0_5] : memref<16x128xf32, #tpu.memory_space<vmem>>, vector<16x128xf32>
    %11 = vector.broadcast %2 : vector<1x128xf32> to vector<16x128xf32>
    %12 = arith.subf %10, %11 : vector<16x128xf32>
    %cst_6 = arith.constant 9.99999974E-6 : f32
    %13 = vector.broadcast %cst_6 : f32 to vector<1x128xf32>
    %14 = arith.addf %9, %13 : vector<1x128xf32>
    %15 = math.rsqrt %14 : vector<1x128xf32>
    %16 = vector.broadcast %15 : vector<1x128xf32> to vector<16x128xf32>
    %17 = arith.mulf %12, %16 : vector<16x128xf32>
    %c0_7 = arith.constant 0 : index
    %c0_8 = arith.constant 0 : index
    %18 = vector.load %arg3[%c0_7, %c0_8] : memref<1x128xf32, #tpu.memory_space<vmem>>, vector<1x128xf32>
    %19 = vector.broadcast %18 : vector<1x128xf32> to vector<16x128xf32>
    %20 = arith.mulf %17, %19 : vector<16x128xf32>
    %c0_9 = arith.constant 0 : index
    %c0_10 = arith.constant 0 : index
    %21 = vector.load %arg4[%c0_9, %c0_10] : memref<1x128xf32, #tpu.memory_space<vmem>>, vector<1x128xf32>
    %22 = vector.broadcast %21 : vector<1x128xf32> to vector<16x128xf32>
    %23 = arith.addf %20, %22 : vector<16x128xf32>
    %cst_11 = arith.constant 0.000000e+00 : f32
    %24 = vector.broadcast %cst_11 : f32 to vector<16x128xf32>
    %25 = arith.maximumf %23, %24 : vector<16x128xf32>
    %26 = arith.truncf %25 : vector<16x128xf32> to vector<16x128xbf16>
    %c0_12 = arith.constant 0 : index
    %c0_13 = arith.constant 0 : index
    %27 = vector.load %arg7[%c0_12, %c0_13] : memref<16x128xbf16, #tpu.memory_space<vmem>>, vector<16x128xbf16>
    tpu.vector_store %arg7[%c0_12, %c0_13], %26 {strides = array<i32>} : memref<16x128xbf16, #tpu.memory_space<vmem>>, vector<16x128xbf16>,
    %c0_14 = arith.constant 0 : index
    %c0_15 = arith.constant 0 : index
    %28 = vector.load %arg5[%c0_14, %c0_15] : memref<128x256xf32, #tpu.memory_space<vmem>>, vector<128x256xf32>
    %cst_16 = arith.constant dense<0.000000e+00> : vector<16x256xf32>
    %29 = tpu.matmul %25, %28, %cst_16 {dimension_numbers = #tpu.dot_dimension_numbers<[1], [0], [0], [1], [0, 0, 1, 1], [], []>} : vector<16x128xf32>, vector<128x256xf32>, vector<16x256xf32> -> vector<16x256xf32>
    %c0_17 = arith.constant 0 : index
    %c0_18 = arith.constant 0 : index
    %30 = vector.load %arg6[%c0_17, %c0_18] : memref<1x256xf32, #tpu.memory_space<vmem>>, vector<1x256xf32>
    %31 = vector.broadcast %30 : vector<1x256xf32> to vector<16x256xf32>
    %32 = arith.addf %29, %31 : vector<16x256xf32>
    %c0_19 = arith.constant 0 : index
    %c0_20 = arith.constant 0 : index
    %33 = vector.load %arg8[%c0_19, %c0_20] : memref<16x256xf32, #tpu.memory_space<vmem>>, vector<16x256xf32>
    tpu.vector_store %arg8[%c0_19, %c0_20], %32 {strides = array<i32>} : memref<16x256xf32, #tpu.memory_space<vmem>>, vector<16x256xf32>,
    return
  }
  func.func @transform_0(%arg0: i32) -> (i32, i32) {
    %c0_i32 = arith.constant 0 : i32
    %c0_i32_0 = arith.constant 0 : i32
    return %arg0, %c0_i32 : i32, i32
  }
  func.func @transform_1(%arg0: i32) -> (i32, i32) {
    %c0_i32 = arith.constant 0 : i32
    %c0_i32_0 = arith.constant 0 : i32
    %c0_i32_1 = arith.constant 0 : i32
    return %c0_i32, %c0_i32_0 : i32, i32
  }
  func.func @transform_2(%arg0: i32) -> (i32, i32) {
    %c0_i32 = arith.constant 0 : i32
    %c0_i32_0 = arith.constant 0 : i32
    %c0_i32_1 = arith.constant 0 : i32
    return %c0_i32, %c0_i32_0 : i32, i32
  }
  func.func @transform_3(%arg0: i32) -> (i32, i32) {
    %c0_i32 = arith.constant 0 : i32
    %c0_i32_0 = arith.constant 0 : i32
    %c0_i32_1 = arith.constant 0 : i32
    return %c0_i32, %c0_i32_0 : i32, i32
  }
  func.func @transform_4(%arg0: i32) -> (i32, i32) {
    %c0_i32 = arith.constant 0 : i32
    %c0_i32_0 = arith.constant 0 : i32
    %c0_i32_1 = arith.constant 0 : i32
    return %c0_i32, %c0_i32_0 : i32, i32
  }
  func.func @transform_5(%arg0: i32) -> (i32, i32) {
    %c0_i32 = arith.constant 0 : i32
    %c0_i32_0 = arith.constant 0 : i32
    %c0_i32_1 = arith.constant 0 : i32
    return %c0_i32, %c0_i32_0 : i32, i32
  }
  func.func @transform_6(%arg0: i32) -> (i32, i32) {
    %c0_i32 = arith.constant 0 : i32
    %c0_i32_0 = arith.constant 0 : i32
    return %arg0, %c0_i32 : i32, i32
  }
  func.func @transform_7(%arg0: i32) -> (i32, i32) {
    %c0_i32 = arith.constant 0 : i32
    %c0_i32_0 = arith.constant 0 : i32
    return %arg0, %c0_i32 : i32, i32
  }
}

module attributes {stable_mosaic.version = 11 : i64} {
  func.func @_gin_aggregate_kernel(%arg0: i32, %arg1: i32, %arg2: memref<16x16xbf16, #tpu.memory_space<vmem>>, %arg3: memref<16x128xbf16, #tpu.memory_space<vmem>>, %arg4: memref<16x128xf32, #tpu.memory_space<vmem>>, %arg5: memref<128x128xf32, #tpu.memory_space<vmem>>, %arg6: memref<16x128xf32, #tpu.memory_space<vmem>>, %arg7: memref<1x2x128xf32, #tpu.memory_space<vmem>>, %arg8: memref<16x128xf32, #tpu.memory_space<vmem>>) attributes {dimension_semantics = [#tpu.dimension_semantics<parallel>, #tpu.dimension_semantics<arbitrary>], iteration_bounds = array<i64: 1, 1>, scalar_prefetch = 0 : i64, scratch_operands = 1 : i64, tpu.core_type = #tpu.core_type<tc>, window_params = [{transform_indices = @transform_0, window_bounds = array<i64: 16, 16>}, {transform_indices = @transform_1, window_bounds = array<i64: 16, 128>}, {transform_indices = @transform_2, window_bounds = array<i64: 16, 128>}, {pipeline_mode = #tpu.pipeline_mode<synchronous>, transform_indices = @transform_3, window_bounds = array<i64: 128, 128>}, {transform_indices = @transform_4, window_bounds = array<i64: 16, 128>}, {transform_indices = @transform_5, window_bounds = array<i64: 1, 2, 128>}]} {
    %c0_i32 = arith.constant 0 : i32
    %0 = arith.cmpi eq, %arg1, %c0_i32 : i32
    %1 = arith.extui %0 : i1 to i32
    %c0_i32_0 = arith.constant 0 : i32
    %2 = arith.cmpi ne, %1, %c0_i32_0 : i32
    scf.if %2 {
      %cst_10 = arith.constant 0.000000e+00 : f32
      %12 = vector.broadcast %cst_10 : f32 to vector<16x128xf32>
      %c0_11 = arith.constant 0 : index
      %c0_12 = arith.constant 0 : index
      %13 = vector.load %arg8[%c0_11, %c0_12] : memref<16x128xf32, #tpu.memory_space<vmem>>, vector<16x128xf32>
      tpu.vector_store %arg8[%c0_11, %c0_12], %12 {strides = array<i32>} : memref<16x128xf32, #tpu.memory_space<vmem>>, vector<16x128xf32>,
    } else {
    }
    %c0 = arith.constant 0 : index
    %c0_1 = arith.constant 0 : index
    %3 = vector.load %arg8[%c0, %c0_1] : memref<16x128xf32, #tpu.memory_space<vmem>>, vector<16x128xf32>
    %c0_2 = arith.constant 0 : index
    %c0_3 = arith.constant 0 : index
    %4 = vector.load %arg2[%c0_2, %c0_3] : memref<16x16xbf16, #tpu.memory_space<vmem>>, vector<16x16xbf16>
    %c0_4 = arith.constant 0 : index
    %c0_5 = arith.constant 0 : index
    %5 = vector.load %arg3[%c0_4, %c0_5] : memref<16x128xbf16, #tpu.memory_space<vmem>>, vector<16x128xbf16>
    %cst = arith.constant dense<0.000000e+00> : vector<16x128xf32>
    %6 = tpu.matmul %4, %5, %cst {dimension_numbers = #tpu.dot_dimension_numbers<[1], [0], [0], [1], [0, 0, 1, 1], [], []>} : vector<16x16xbf16>, vector<16x128xbf16>, vector<16x128xf32> -> vector<16x128xf32>
    %7 = arith.addf %3, %6 : vector<16x128xf32>
    %c0_6 = arith.constant 0 : index
    %c0_7 = arith.constant 0 : index
    %8 = vector.load %arg8[%c0_6, %c0_7] : memref<16x128xf32, #tpu.memory_space<vmem>>, vector<16x128xf32>
    tpu.vector_store %arg8[%c0_6, %c0_7], %7 {strides = array<i32>} : memref<16x128xf32, #tpu.memory_space<vmem>>, vector<16x128xf32>,
    %c0_i32_8 = arith.constant 0 : i32
    %9 = arith.cmpi eq, %arg1, %c0_i32_8 : i32
    %10 = arith.extui %9 : i1 to i32
    %c0_i32_9 = arith.constant 0 : i32
    %11 = arith.cmpi ne, %10, %c0_i32_9 : i32
    scf.if %11 {
      %c0_10 = arith.constant 0 : index
      %c0_11 = arith.constant 0 : index
      %12 = vector.load %arg4[%c0_10, %c0_11] : memref<16x128xf32, #tpu.memory_space<vmem>>, vector<16x128xf32>
      %c0_12 = arith.constant 0 : index
      %c0_13 = arith.constant 0 : index
      %13 = vector.load %arg8[%c0_12, %c0_13] : memref<16x128xf32, #tpu.memory_space<vmem>>, vector<16x128xf32>
      %c0_14 = arith.constant 0 : index
      %c0_15 = arith.constant 0 : index
      %14 = vector.load %arg5[%c0_14, %c0_15] : memref<128x128xf32, #tpu.memory_space<vmem>>, vector<128x128xf32>
      %cst_16 = arith.constant dense<0.000000e+00> : vector<16x128xf32>
      %15 = tpu.matmul %13, %14, %cst_16 {dimension_numbers = #tpu.dot_dimension_numbers<[1], [0], [0], [1], [0, 0, 1, 1], [], []>} : vector<16x128xf32>, vector<128x128xf32>, vector<16x128xf32> -> vector<16x128xf32>
      %16 = arith.addf %12, %15 : vector<16x128xf32>
      %c0_17 = arith.constant 0 : index
      %c0_18 = arith.constant 0 : index
      %17 = vector.load %arg6[%c0_17, %c0_18] : memref<16x128xf32, #tpu.memory_space<vmem>>, vector<16x128xf32>
      tpu.vector_store %arg6[%c0_17, %c0_18], %16 {strides = array<i32>} : memref<16x128xf32, #tpu.memory_space<vmem>>, vector<16x128xf32>,
      %cst_19 = arith.constant dense<0.000000e+00> : vector<128xf32>
      %18 = vector.multi_reduction <add>, %16, %cst_19 [0] : vector<16x128xf32> to vector<128xf32>
      %19 = vector.shape_cast %18 : vector<128xf32> to vector<1x128xf32>
      %20 = arith.mulf %16, %16 : vector<16x128xf32>
      %cst_20 = arith.constant dense<0.000000e+00> : vector<128xf32>
      %21 = vector.multi_reduction <add>, %20, %cst_20 [0] : vector<16x128xf32> to vector<128xf32>
      %22 = vector.shape_cast %21 : vector<128xf32> to vector<1x128xf32>
      %23 = tpu.concatenate %19, %22 in 0 : vector<1x128xf32>, vector<1x128xf32> -> vector<2x128xf32>
      %c0_21 = arith.constant 0 : index
      %c0_22 = arith.constant 0 : index
      %c0_23 = arith.constant 0 : index
      %24 = vector.load %arg7[%c0_21, %c0_22, %c0_23] : memref<1x2x128xf32, #tpu.memory_space<vmem>>, vector<1x2x128xf32>
      %25 = vector.shape_cast %24 : vector<1x2x128xf32> to vector<2x128xf32>
      %26 = vector.shape_cast %23 : vector<2x128xf32> to vector<1x2x128xf32>
      tpu.vector_store %arg7[%c0_21, %c0_22, %c0_23], %26 {strides = array<i32>} : memref<1x2x128xf32, #tpu.memory_space<vmem>>, vector<1x2x128xf32>,
    } else {
    }
    return
  }
  func.func @transform_0(%arg0: i32, %arg1: i32) -> (i32, i32) {
    %c0_i32 = arith.constant 0 : i32
    return %arg0, %arg1 : i32, i32
  }
  func.func @transform_1(%arg0: i32, %arg1: i32) -> (i32, i32) {
    %c0_i32 = arith.constant 0 : i32
    %c0_i32_0 = arith.constant 0 : i32
    return %arg1, %c0_i32 : i32, i32
  }
  func.func @transform_2(%arg0: i32, %arg1: i32) -> (i32, i32) {
    %c1_i32 = arith.constant 1 : i32
    %c0_i32 = arith.constant 0 : i32
    return %arg0, %c1_i32 : i32, i32
  }
  func.func @transform_3(%arg0: i32, %arg1: i32) -> (i32, i32) {
    %c0_i32 = arith.constant 0 : i32
    %c0_i32_0 = arith.constant 0 : i32
    %c0_i32_1 = arith.constant 0 : i32
    return %c0_i32, %c0_i32_0 : i32, i32
  }
  func.func @transform_4(%arg0: i32, %arg1: i32) -> (i32, i32) {
    %c0_i32 = arith.constant 0 : i32
    %c0_i32_0 = arith.constant 0 : i32
    return %arg0, %c0_i32 : i32, i32
  }
  func.func @transform_5(%arg0: i32, %arg1: i32) -> (i32, i32, i32) {
    %c0_i32 = arith.constant 0 : i32
    %c0_i32_0 = arith.constant 0 : i32
    %c0_i32_1 = arith.constant 0 : i32
    return %arg0, %c0_i32, %c0_i32_0 : i32, i32, i32
  }
}

</mosaic_0001>

<llo_original>
// kernel: gnn_forward.6
$region0: #{gnn_forward.6}
  #allocation0 [shape = 'u32[]', space=smem, size = 0x4, offset = 0x4, fixed_abs, tag = 'smem constant byte address 0x4 - core index']
  #allocation1 [shape = 'u32[144,128]{1,0:T(1,128)}', space=vmem, size = 0x12000, scoped, tag = 'internal scratch']
  #allocation2 [shape = 'f32[16,128]{1,0:T(8,128)}', space=vmem, size = 0x2000, scoped, tag = 'scratch operand']
  %s0 = inlined_call_operand.vmem [shape: bf16[16,16], index: 0, kind: input, shape index: {}]
  %s1 = inlined_call_operand.vmem [shape: bf16[16,128], index: 1, kind: input, shape index: {}]
  %s2 = inlined_call_operand.vmem [shape: f32[16,256], index: 2, kind: input, shape index: {}]
  %s3 = inlined_call_operand.vmem [shape: f32[128,128], index: 3, kind: input, shape index: {}]
  %s4 = inlined_call_operand.vmem [shape: f32[16,128], index: 4, kind: output, shape index: {0}]
  %s5 = inlined_call_operand.vmem [shape: f32[1,2,128], index: 5, kind: output, shape index: {1}]
  %6 = xla_tuple %s4, %s5
  %s7 = sld [smem:[#allocation0]]
  $region80: #{gnn_forward.6} parent=0
    _
  %s9 = ssub.s32 1, %s7
  %s10 = scalar_select 0, %s9, %s7
  $region1: #{gnn_forward.6} parent=0
    #allocation3 [shape = 'u8[8192]{0}', space=vmem, size = 0x2000, scoped, tag = 'input window, operand 2, single buffered']
    // Predicated region
    $region2: #{gnn_forward.6} parent=1 // pred_check
      _
    $region3: #{gnn_forward.6} parent=1 // pred_check_branch
      %12 = sbr.rel (0) target = $region5
    $region4: #{gnn_forward.6} parent=1 // pred_region
      _
    $region5: #{gnn_forward.6} parent=1 // pred_fallthru
      _
    // Predicated region
    $region6: #{gnn_forward.6} parent=1 // pred_check
      _
    $region7: #{gnn_forward.6} parent=1 // pred_check_branch
      %14 = sbr.rel (0) target = $region9
    $region8: #{gnn_forward.6} parent=1 // pred_region
      _
    $region9: #{gnn_forward.6} parent=1 // pred_fallthru
      _
    // Predicated region
    $region10: #{gnn_forward.6} parent=1 // pred_check
      _
    $region11: #{gnn_forward.6} parent=1 // pred_check_branch
      %16 = sbr.rel (0) target = $region13
    $region12: #{gnn_forward.6} parent=1 // pred_region
      %s17 = scalar_lea.vmem %s2, 8
      // Predicated region
      $region14: #{gnn_forward.6} parent=12 // pred_check
        _
      $region15: #{gnn_forward.6} parent=12 // pred_check_branch
        %19 = sbr.rel (0) target = $region17
      $region16: #{gnn_forward.6} parent=12 // pred_region
        // Predicated region
        $region18: #{gnn_forward.6} parent=16 // pred_check
          _
        $region19: #{gnn_forward.6} parent=16 // pred_check_branch
          %21 = sbr.rel (0) target = $region21
        $region20: #{gnn_forward.6} parent=16 // pred_region
          // Predicated region
          $region33: #{gnn_forward.6} parent=20 // pred_check
            _
          $region34: #{gnn_forward.6} parent=20 // pred_check_branch
            %38 = sbr.rel (0) target = $region36
          $region35: #{gnn_forward.6} parent=20 // pred_region
            loop: start=0, step=1, limit=1
            $region37: #{gnn_forward.6} parent=35 // loop_pre_header
              _
            $region38: #{gnn_forward.6} parent=35 // loop_header
              %s40 = sphi 0, %s44
              %p41 = scmp.ge.s32.totalorder %s40, 1
              %s45 = sphi %s17, %s17
              %s46 = sphi [#allocation3], [#allocation3]
            $region39: #{gnn_forward.6} parent=35 // loop_header_branch
              %43 = sbr.rel (%p41) target = $region43
            $region40: #{gnn_forward.6} parent=35 // loop_body
              %v47 = vld [vmem:[%s45] sm:$0xff]
              %48 = vst [vmem:[%s46] sm:$0xff] %v47
              %v49 = vld [vmem:[%s45 + $0x10] sm:$0xff]
              %50 = vst [vmem:[%s46 + $0x8] sm:$0xff] %v49
            $region41: #{gnn_forward.6} parent=35 // loop_footer
              %s44 = sadd.s32 1, %s40
            $region42: #{gnn_forward.6} parent=35 // loop_footer_branch
              %39 = sbr.rel target = $region38
            $region43: #{gnn_forward.6} parent=35 // loop_exit
              _
          $region36: #{gnn_forward.6} parent=20 // pred_fallthru
            _
          // Predicated region
          $region44: #{gnn_forward.6} parent=20 // pred_check
            _
          $region45: #{gnn_forward.6} parent=20 // pred_check_branch
            %52 = sbr.rel target = $region47
          $region46: #{gnn_forward.6} parent=20 // pred_region
            _
          $region47: #{gnn_forward.6} parent=20 // pred_fallthru
            _
        $region21: #{gnn_forward.6} parent=16 // pred_fallthru
          _
        // Predicated region
        $region22: #{gnn_forward.6} parent=16 // pred_check
          _
        $region23: #{gnn_forward.6} parent=16 // pred_check_branch
          %23 = sbr.rel target = $region25
        $region24: #{gnn_forward.6} parent=16 // pred_region
          loop: start=0, step=1, limit=1
          $region26: #{gnn_forward.6} parent=24 // loop_pre_header
            _
          $region27: #{gnn_forward.6} parent=24 // loop_header
            %s26 = sphi 0, %s30
            %p27 = scmp.ge.s32.totalorder %s26, 1
            %s31 = sphi %s17, %s17
            %s32 = sphi [#allocation3], [#allocation3]
          $region28: #{gnn_forward.6} parent=24 // loop_header_branch
            %29 = sbr.rel (%p27) target = $region32
          $region29: #{gnn_forward.6} parent=24 // loop_body
            %v33 = vld [vmem:[%s31] sm:$0xff]
            %34 = vst [vmem:[%s32] sm:$0xff] %v33
            %v35 = vld [vmem:[%s31 + $0x10] sm:$0xff]
            %36 = vst [vmem:[%s32 + $0x8] sm:$0xff] %v35
          $region30: #{gnn_forward.6} parent=24 // loop_footer
            %s30 = sadd.s32 1, %s26
          $region31: #{gnn_forward.6} parent=24 // loop_footer_branch
            %25 = sbr.rel target = $region27
          $region32: #{gnn_forward.6} parent=24 // loop_exit
            _
        $region25: #{gnn_forward.6} parent=16 // pred_fallthru
          _
      $region17: #{gnn_forward.6} parent=12 // pred_fallthru
        _
      %53 = vnop
    $region13: #{gnn_forward.6} parent=1 // pred_fallthru
      _
    // Predicated region
    $region48: #{gnn_forward.6} parent=1 // pred_check
      _
    $region49: #{gnn_forward.6} parent=1 // pred_check_branch
      %55 = sbr.rel (0) target = $region51
    $region50: #{gnn_forward.6} parent=1 // pred_region
      _
    $region51: #{gnn_forward.6} parent=1 // pred_fallthru
      _
    // Predicated region
    $region52: #{gnn_forward.6} parent=1 // pred_check
      _
    $region53: #{gnn_forward.6} parent=1 // pred_check_branch
      %57 = sbr.rel (0) target = $region55
    $region54: #{gnn_forward.6} parent=1 // pred_region
      _
    $region55: #{gnn_forward.6} parent=1 // pred_fallthru
      _
    %p59 = scmp.eq.s32.totalorder 0, 0
    // Predicated region
    $region56: #{gnn_forward.6} parent=1 // pred_check
      %p60 = pneg %p59
    $region57: #{gnn_forward.6} parent=1 // pred_check_branch
      %62 = sbr.rel (%p60) target = $region59
    $region58: #{gnn_forward.6} parent=1 // pred_region
      %63 = vst [vmem:[#allocation2] sm:$0xff] 0.0
      %64 = vst [vmem:[#allocation2 + $0x8] sm:$0xff] 0.0
    $region59: #{gnn_forward.6} parent=1 // pred_fallthru
      _
    %v65 = vld [vmem:[#allocation2] sm:$0xff]
    %v66 = vld [vmem:[#allocation2 + $0x8] sm:$0xff]
    %v67 = vld [vmem:[%s0] sm:$0xf]
    %v68 = vld [vmem:[%s0 + $0x4] sm:$0xf]
    %v69 = vld [vmem:[%s1] sm:$0xf]
    %v70 = vld [vmem:[%s1 + $0x4] sm:$0xf]
    %v73 = vunpack.c.l.b16 %v67
    %v74 = vunpack.c.l.b16 %v68
    %v75 = vpack.c.b16 %v74, %v73
    %v78 = vunpack.c.l.b16 %v69
    %v79 = vunpack.c.l.b16 %v70
    %v80 = vpack.c.b16 %v79, %v78
    %vm82 = vcmask 130048
    %v84 = vsel %vm82, %v75, 0
    %86 = vmatprep.subr.bf16.mxu0 0
    %87 = vmatpush1.bf16.msra.mxu0 %v80
    %88 = vmatprep.subr.bf16.mxu0 0
    %89 = vmatpush1.bf16.msra.mxu0 0
    %90 = vmatprep.subr.bf16.mxu0 0
    %91 = vmatpush1.bf16.msra.mxu0 0
    %92 = vmatprep.subr.bf16.mxu0 0
    %93 = vmatpush1.bf16.msra.mxu0 0
    %94 = vmatprep.subr.bf16.mxu0 0
    %95 = vmatpush1.bf16.msra.mxu0 0
    %96 = vmatprep.subr.bf16.mxu0 0
    %97 = vmatpush1.bf16.msra.mxu0 0
    %98 = vmatprep.subr.bf16.mxu0 0
    %99 = vmatpush1.bf16.msra.mxu0 0
    %100 = vmatprep.subr.bf16.mxu0 0
    %101 = vmatpush1.bf16.msra.mxu0 0
    %102 = vmatprep.subr.bf16.mxu0 0
    %103 = vmatpush1.bf16.msra.mxu0 0
    %104 = vmatprep.subr.bf16.mxu0 0
    %105 = vmatpush1.bf16.msra.mxu0 0
    %106 = vmatprep.subr.bf16.mxu0 0
    %107 = vmatpush1.bf16.msra.mxu0 0
    %108 = vmatprep.subr.bf16.mxu0 0
    %109 = vmatpush1.bf16.msra.mxu0 0
    %110 = vmatprep.subr.bf16.mxu0 0
    %111 = vmatpush1.bf16.msra.mxu0 0
    %112 = vmatprep.subr.bf16.mxu0 0
    %113 = vmatpush1.bf16.msra.mxu0 0
    %114 = vmatprep.subr.bf16.mxu0 0
    %115 = vmatpush1.bf16.msra.mxu0 0
    %116 = vmatprep.subr.bf16.mxu0 0
    %117 = vmatpush1.bf16.msra.mxu0 0
    %118 = vmatprep.mubr.bf16.mxu0 0
    %119 = vmatmul.mubr.bf16.gmra.mrb[0].mxu0 %v84
    %v120 = vpop.f32.mrb[0].mxu0
    %v121 = vadd.f32 0.0, %v120
    %v122 = vpop.f32.mrb[0].mxu0
    %v123 = vpop.f32.mrb[0].mxu0
    %v124 = vadd.f32 0.0, %v123
    %v125 = vpop.f32.mrb[0].mxu0
    %126 = vdwg.mxu0
    %v127 = vadd.f32 %v65, %v121
    %v128 = vadd.f32 %v66, %v124
    %129 = vst [vmem:[#allocation2] sm:$0xff] %v127
    %130 = vst [vmem:[#allocation2 + $0x8] sm:$0xff] %v128
    // Predicated region
    $region60: #{gnn_forward.6} parent=1 // pred_check
      %p131 = pneg %p59
    $region61: #{gnn_forward.6} parent=1 // pred_check_branch
      %133 = sbr.rel (%p131) target = $region63
    $region62: #{gnn_forward.6} parent=1 // pred_region
      %v134 = vld [vmem:[#allocation3] sm:$0xff]
      %v135 = vld [vmem:[#allocation3 + $0x8] sm:$0xff]
      %v136 = vld [vmem:[#allocation2] sm:$0xff]
      %v137 = vld [vmem:[#allocation2 + $0x8] sm:$0xff]
      %v138 = vld [vmem:[%s3] sm:$0xff]
      %v139 = vld [vmem:[%s3 + $0x8] sm:$0xff]
      %v140 = vld [vmem:[%s3 + $0x10] sm:$0xff]
      %v141 = vld [vmem:[%s3 + $0x18] sm:$0xff]
      %v142 = vld [vmem:[%s3 + $0x20] sm:$0xff]
      %v143 = vld [vmem:[%s3 + $0x28] sm:$0xff]
      %v144 = vld [vmem:[%s3 + $0x30] sm:$0xff]
      %v145 = vld [vmem:[%s3 + $0x38] sm:$0xff]
      %v146 = vld [vmem:[%s3 + $0x40] sm:$0xff]
      %v147 = vld [vmem:[%s3 + $0x48] sm:$0xff]
      %v148 = vld [vmem:[%s3 + $0x50] sm:$0xff]
      %v149 = vld [vmem:[%s3 + $0x58] sm:$0xff]
      %v150 = vld [vmem:[%s3 + $0x60] sm:$0xff]
      %v151 = vld [vmem:[%s3 + $0x68] sm:$0xff]
      %v152 = vld [vmem:[%s3 + $0x70] sm:$0xff]
      %v153 = vld [vmem:[%s3 + $0x78] sm:$0xff]
      %154 = vmatprep.subr.mxu0 0.0
      %155 = vmatpush1.msra.mxu0 %v138
      %156 = vmatprep.subr.mxu0 0.0
      %157 = vmatpush1.msra.mxu0 %v139
      %158 = vmatprep.subr.mxu0 0.0
      %159 = vmatpush1.msra.mxu0 %v140
      %160 = vmatprep.subr.mxu0 0.0
      %161 = vmatpush1.msra.mxu0 %v141
      %162 = vmatprep.subr.mxu0 0.0
      %163 = vmatpush1.msra.mxu0 %v142
      %164 = vmatprep.subr.mxu0 0.0
      %165 = vmatpush1.msra.mxu0 %v143
      %166 = vmatprep.subr.mxu0 0.0
      %167 = vmatpush1.msra.mxu0 %v144
      %168 = vmatprep.subr.mxu0 0.0
      %169 = vmatpush1.msra.mxu0 %v145
      %170 = vmatprep.subr.mxu0 0.0
      %171 = vmatpush1.msra.mxu0 %v146
      %172 = vmatprep.subr.mxu0 0.0
      %173 = vmatpush1.msra.mxu0 %v147
      %174 = vmatprep.subr.mxu0 0.0
      %175 = vmatpush1.msra.mxu0 %v148
      %176 = vmatprep.subr.mxu0 0.0
      %177 = vmatpush1.msra.mxu0 %v149
      %178 = vmatprep.subr.mxu0 0.0
      %179 = vmatpush1.msra.mxu0 %v150
      %180 = vmatprep.subr.mxu0 0.0
      %181 = vmatpush1.msra.mxu0 %v151
      %182 = vmatprep.subr.mxu0 0.0
      %183 = vmatpush1.msra.mxu0 %v152
      %184 = vmatprep.subr.mxu0 0.0
      %185 = vmatpush1.msra.mxu0 %v153
      %186 = vmatprep.subr.mxu0 0.0
      %187 = vmatpush1.msra.mxu0 0.0
      %188 = vmatprep.subr.mxu0 0.0
      %189 = vmatpush1.msra.mxu0 0.0
      %190 = vmatprep.subr.mxu0 0.0
      %191 = vmatpush1.msra.mxu0 0.0
      %192 = vmatprep.subr.mxu0 0.0
      %193 = vmatpush1.msra.mxu0 0.0
      %194 = vmatprep.subr.mxu0 0.0
      %195 = vmatpush1.msra.mxu0 0.0
      %196 = vmatprep.subr.mxu0 0.0
      %197 = vmatpush1.msra.mxu0 0.0
      %198 = vmatprep.subr.mxu0 0.0
      %199 = vmatpush1.msra.mxu0 0.0
      %200 = vmatprep.subr.mxu0 0.0
      %201 = vmatpush1.msra.mxu0 0.0
      %202 = vmatprep.subr.mxu0 0.0
      %203 = vmatpush1.msra.mxu0 0.0
      %204 = vmatprep.subr.mxu0 0.0
      %205 = vmatpush1.msra.mxu0 0.0
      %206 = vmatprep.subr.mxu0 0.0
      %207 = vmatpush1.msra.mxu0 0.0
      %208 = vmatprep.subr.mxu0 0.0
      %209 = vmatpush1.msra.mxu0 0.0
      %210 = vmatprep.subr.mxu0 0.0
      %211 = vmatpush1.msra.mxu0 0.0
      %212 = vmatprep.subr.mxu0 0.0
      %213 = vmatpush1.msra.mxu0 0.0
      %214 = vmatprep.subr.mxu0 0.0
      %215 = vmatpush1.msra.mxu0 0.0
      %216 = vmatprep.subr.mxu0 0.0
      %217 = vmatpush1.msra.mxu0 0.0
      %218 = vmatprep.mubr.f32.mxu0 0.0
      %219 = vmatmul.mubr.f32.gmra.mrb[0].mxu0 %v136
      %v220 = vpop.f32.mrb[0].mxu0
      %v221 = vadd.f32 0.0, %v220
      %v222 = vpop.f32.mrb[0].mxu0
      %223 = vmatprep.mubr.f32.mxu0 0.0
      %224 = vmatmul.mubr.f32.gmra.mrb[0].mxu0 %v137
      %v225 = vpop.f32.mrb[0].mxu0
      %v226 = vadd.f32 0.0, %v225
      %v227 = vpop.f32.mrb[0].mxu0
      %228 = vdwg.mxu0
      %v229 = vadd.f32 %v134, %v221
      %v230 = vadd.f32 %v135, %v226
      %231 = vst [vmem:[%s4] sm:$0xff] %v229
      %232 = vst [vmem:[%s4 + $0x8] sm:$0xff] %v230
      %v233 = vadd.f32 %v229, %v230
      %v234 = vrot.slane %v233, 4
      %v235 = vadd.f32 %v233, %v234
      %v236 = vrot.slane %v235, 2
      %v237 = vadd.f32 %v235, %v236
      %v238 = vrot.slane %v237, 1
      %v239 = vadd.f32 %v237, %v238
      %v240 = vmul.f32 %v229, %v229
      %v241 = vmul.f32 %v230, %v230
      %v242 = vadd.f32 %v240, %v241
      %v243 = vrot.slane %v242, 4
      %v244 = vadd.f32 %v242, %v243
      %v245 = vrot.slane %v244, 2
      %v246 = vadd.f32 %v244, %v245
      %v247 = vrot.slane %v246, 1
      %v248 = vadd.f32 %v246, %v247
      %vm249 = vcmask 1040384
      %v250 = vsel %vm249, %v239, %v248
      %251 = vst [vmem:[%s5] sm:$0x3] %v250
    $region63: #{gnn_forward.6} parent=1 // pred_fallthru
      _
    // Predicated region
    $region64: #{gnn_forward.6} parent=1 // pred_check
      _
    $region65: #{gnn_forward.6} parent=1 // pred_check_branch
      %253 = sbr.rel (0) target = $region67
    $region66: #{gnn_forward.6} parent=1 // pred_region
      _
    $region67: #{gnn_forward.6} parent=1 // pred_fallthru
      _
    // Predicated region
    $region68: #{gnn_forward.6} parent=1 // pred_check
      _
    $region69: #{gnn_forward.6} parent=1 // pred_check_branch
      %255 = sbr.rel (0) target = $region71
    $region70: #{gnn_forward.6} parent=1 // pred_region
      _
    $region71: #{gnn_forward.6} parent=1 // pred_fallthru
      _
    // Predicated region
    $region72: #{gnn_forward.6} parent=1 // pred_check
      _
    $region73: #{gnn_forward.6} parent=1 // pred_check_branch
      %257 = sbr.rel (0) target = $region75
    $region74: #{gnn_forward.6} parent=1 // pred_region
      _
    $region75: #{gnn_forward.6} parent=1 // pred_fallthru
      _
    // Predicated region
    $region76: #{gnn_forward.6} parent=1 // pred_check
      _
    $region77: #{gnn_forward.6} parent=1 // pred_check_branch
      %259 = sbr.rel (0) target = $region79
    $region78: #{gnn_forward.6} parent=1 // pred_region
      _
    $region79: #{gnn_forward.6} parent=1 // pred_fallthru
      _

// kernel: gnn_forward.5
$region0: #{gnn_forward.5}
  #allocation0 [shape = 'u32[]', space=smem, size = 0x4, offset = 0x4, fixed_abs, tag = 'smem constant byte address 0x4 - core index']
  #allocation1 [shape = 'u32[144,128]{1,0:T(1,128)}', space=vmem, size = 0x12000, scoped, tag = 'internal scratch']
  %s0 = inlined_call_operand.vmem [shape: f32[16,128], index: 0, kind: input, shape index: {}]
  %s1 = inlined_call_operand.vmem [shape: f32[2,128], index: 1, kind: input, shape index: {}]
  %s2 = inlined_call_operand.vmem [shape: f32[1,128], index: 2, kind: input, shape index: {}]
  %s3 = inlined_call_operand.vmem [shape: f32[1,128], index: 3, kind: input, shape index: {}]
  %s4 = inlined_call_operand.vmem [shape: f32[128,256], index: 4, kind: input, shape index: {}]
  %s5 = inlined_call_operand.vmem [shape: f32[1,256], index: 5, kind: input, shape index: {}]
  %s6 = inlined_call_operand.vmem [shape: bf16[16,128], index: 6, kind: output, shape index: {0}]
  %s7 = inlined_call_operand.vmem [shape: f32[16,256], index: 7, kind: output, shape index: {1}]
  %8 = xla_tuple %s6, %s7
  %s9 = sld [smem:[#allocation0]]
  $region42: #{gnn_forward.5} parent=0
    _
  %s11 = ssub.s32 1, %s9
  %s12 = scalar_select 0, %s11, %s9
  // Predicated region
  $region2: #{gnn_forward.5} parent=0 // pred_check
    _
  $region3: #{gnn_forward.5} parent=0 // pred_check_branch
    %14 = sbr.rel (0) target = $region5
  $region4: #{gnn_forward.5} parent=0 // pred_region
    _
  $region5: #{gnn_forward.5} parent=0 // pred_fallthru
    _
  // Predicated region
  $region6: #{gnn_forward.5} parent=0 // pred_check
    _
  $region7: #{gnn_forward.5} parent=0 // pred_check_branch
    %16 = sbr.rel (0) target = $region9
  $region8: #{gnn_forward.5} parent=0 // pred_region
    _
  $region9: #{gnn_forward.5} parent=0 // pred_fallthru
    _
  // Predicated region
  $region10: #{gnn_forward.5} parent=0 // pred_check
    _
  $region11: #{gnn_forward.5} parent=0 // pred_check_branch
    %18 = sbr.rel (0) target = $region13
  $region12: #{gnn_forward.5} parent=0 // pred_region
    _
  $region13: #{gnn_forward.5} parent=0 // pred_fallthru
    _
  // Predicated region
  $region14: #{gnn_forward.5} parent=0 // pred_check
    _
  $region15: #{gnn_forward.5} parent=0 // pred_check_branch
    %20 = sbr.rel (0) target = $region17
  $region16: #{gnn_forward.5} parent=0 // pred_region
    _
  $region17: #{gnn_forward.5} parent=0 // pred_fallthru
    _
  // Predicated region
  $region18: #{gnn_forward.5} parent=0 // pred_check
    _
  $region19: #{gnn_forward.5} parent=0 // pred_check_branch
    %22 = sbr.rel (0) target = $region21
  $region20: #{gnn_forward.5} parent=0 // pred_region
    _
  $region21: #{gnn_forward.5} parent=0 // pred_fallthru
    _
  // Predicated region
  $region22: #{gnn_forward.5} parent=0 // pred_check
    _
  $region23: #{gnn_forward.5} parent=0 // pred_check_branch
    %24 = sbr.rel (0) target = $region25
  $region24: #{gnn_forward.5} parent=0 // pred_region
    _
  $region25: #{gnn_forward.5} parent=0 // pred_fallthru
    _
  %v25 = vld [vmem:[%s1] sm:$0x1]
  %v26 = vmul.f32 %v25, 0.0625
  %v27 = vld [vmem:[%s1 + $0x1] sm:$0x1]
  %v28 = vmul.f32 %v27, 0.0625
  %v29 = vmul.f32 %v26, %v26
  %v30 = vsub.f32 %v28, %v29
  %v31 = vmax.f32 %v30, 0.0
  %v32 = vld [vmem:[%s0] sm:$0xff]
  %v33 = vld [vmem:[%s0 + $0x8] sm:$0xff]
  %v34 = vlaneseq
  %v35 = vshrl.u32 %v34, 7
  %v36 = vsub.s32 0, %v35
  %v37 = vrot.slane %v26, %v36
  %v38 = vsub.f32 %v32, %v37
  %v39 = vsub.f32 %v33, %v37
  %v40 = vadd.f32 %v31, 1e-05
  %v41 = vrsqrt.pop %v40
  %v42 = vlaneseq
  %v43 = vshrl.u32 %v42, 7
  %v44 = vsub.s32 0, %v43
  %v45 = vrot.slane %v41, %v44
  %v46 = vmul.f32 %v38, %v45
  %v47 = vmul.f32 %v39, %v45
  %v48 = vld [vmem:[%s2] sm:$0x1]
  %v50 = vlaneseq
  %v51 = vshrl.u32 %v50, 7
  %v52 = vsub.s32 0, %v51
  %v53 = vrot.slane %v48, %v52
  %v55 = vmul.f32 %v46, %v53
  %v56 = vmul.f32 %v47, %v53
  %v57 = vld [vmem:[%s3] sm:$0x1]
  %v59 = vlaneseq
  %v60 = vshrl.u32 %v59, 7
  %v61 = vsub.s32 0, %v60
  %v62 = vrot.slane %v57, %v61
  %v64 = vadd.f32 %v55, %v62
  %v65 = vadd.f32 %v56, %v62
  %v66 = vmax.f32 %v64, 0.0
  %v67 = vmax.f32 %v65, 0.0
  %v68 = vpack.c.bf16 %v67, %v66
  %v70 = vunpack.c.l.b16 %v68
  %v71 = vunpack.c.h.b16 %v68
  %v72 = vpack.c.b16 %v70, %v70
  %v73 = vpack.c.b16 %v71, %v71
  %76 = vst [vmem:[%s6] sm:$0xf] %v72
  %77 = vst [vmem:[%s6 + $0x4] sm:$0xf] %v73
  %v78 = vld [vmem:[%s4] sm:$0xff]
  %v79 = vld [vmem:[%s4 + $0x8] sm:$0xff]
  %v80 = vld [vmem:[%s4 + $0x10] sm:$0xff]
  %v81 = vld [vmem:[%s4 + $0x18] sm:$0xff]
  %v82 = vld [vmem:[%s4 + $0x20] sm:$0xff]
  %v83 = vld [vmem:[%s4 + $0x28] sm:$0xff]
  %v84 = vld [vmem:[%s4 + $0x30] sm:$0xff]
  %v85 = vld [vmem:[%s4 + $0x38] sm:$0xff]
  %v86 = vld [vmem:[%s4 + $0x40] sm:$0xff]
  %v87 = vld [vmem:[%s4 + $0x48] sm:$0xff]
  %v88 = vld [vmem:[%s4 + $0x50] sm:$0xff]
  %v89 = vld [vmem:[%s4 + $0x58] sm:$0xff]
  %v90 = vld [vmem:[%s4 + $0x60] sm:$0xff]
  %v91 = vld [vmem:[%s4 + $0x68] sm:$0xff]
  %v92 = vld [vmem:[%s4 + $0x70] sm:$0xff]
  %v93 = vld [vmem:[%s4 + $0x78] sm:$0xff]
  %v94 = vld [vmem:[%s4 + $0x80] sm:$0xff]
  %v95 = vld [vmem:[%s4 + $0x88] sm:$0xff]
  %v96 = vld [vmem:[%s4 + $0x90] sm:$0xff]
  %v97 = vld [vmem:[%s4 + $0x98] sm:$0xff]
  %v98 = vld [vmem:[%s4 + $0xa0] sm:$0xff]
  %v99 = vld [vmem:[%s4 + $0xa8] sm:$0xff]
  %v100 = vld [vmem:[%s4 + $0xb0] sm:$0xff]
  %v101 = vld [vmem:[%s4 + $0xb8] sm:$0xff]
  %v102 = vld [vmem:[%s4 + $0xc0] sm:$0xff]
  %v103 = vld [vmem:[%s4 + $0xc8] sm:$0xff]
  %v104 = vld [vmem:[%s4 + $0xd0] sm:$0xff]
  %v105 = vld [vmem:[%s4 + $0xd8] sm:$0xff]
  %v106 = vld [vmem:[%s4 + $0xe0] sm:$0xff]
  %v107 = vld [vmem:[%s4 + $0xe8] sm:$0xff]
  %v108 = vld [vmem:[%s4 + $0xf0] sm:$0xff]
  %v109 = vld [vmem:[%s4 + $0xf8] sm:$0xff]
  %v110 = vld [vmem:[%s5] sm:$0x3]
  %v112 = vlaneseq
  %v113 = vshrl.u32 %v112, 7
  %v114 = vsub.s32 0, %v113
  %v115 = vrot.slane %v110, %v114
  %v116 = vlaneseq
  %v117 = vshrl.u32 %v116, 7
  %v118 = vsub.s32 1, %v117
  %v119 = vrot.slane %v110, %v118
  %122 = vmatprep.subr.mxu0 %v79
  %123 = vmatpush1.msra.mxu0 %v78
  %124 = vmatprep.subr.mxu0 %v81
  %125 = vmatpush1.msra.mxu0 %v80
  %126 = vmatprep.subr.mxu0 %v83
  %127 = vmatpush1.msra.mxu0 %v82
  %128 = vmatprep.subr.mxu0 %v85
  %129 = vmatpush1.msra.mxu0 %v84
  %130 = vmatprep.subr.mxu0 %v87
  %131 = vmatpush1.msra.mxu0 %v86
  %132 = vmatprep.subr.mxu0 %v89
  %133 = vmatpush1.msra.mxu0 %v88
  %134 = vmatprep.subr.mxu0 %v91
  %135 = vmatpush1.msra.mxu0 %v90
  %136 = vmatprep.subr.mxu0 %v93
  %137 = vmatpush1.msra.mxu0 %v92
  %138 = vmatprep.subr.mxu0 %v95
  %139 = vmatpush1.msra.mxu0 %v94
  %140 = vmatprep.subr.mxu0 %v97
  %141 = vmatpush1.msra.mxu0 %v96
  %142 = vmatprep.subr.mxu0 %v99
  %143 = vmatpush1.msra.mxu0 %v98
  %144 = vmatprep.subr.mxu0 %v101
  %145 = vmatpush1.msra.mxu0 %v100
  %146 = vmatprep.subr.mxu0 %v103
  %147 = vmatpush1.msra.mxu0 %v102
  %148 = vmatprep.subr.mxu0 %v105
  %149 = vmatpush1.msra.mxu0 %v104
  %150 = vmatprep.subr.mxu0 %v107
  %151 = vmatpush1.msra.mxu0 %v106
  %152 = vmatprep.subr.mxu0 %v109
  %153 = vmatpush1.msra.mxu0 %v108
  %154 = vmatprep.subr.mxu0 0.0
  %155 = vmatpush1.msra.mxu0 0.0
  %156 = vmatprep.subr.mxu0 0.0
  %157 = vmatpush1.msra.mxu0 0.0
  %158 = vmatprep.subr.mxu0 0.0
  %159 = vmatpush1.msra.mxu0 0.0
  %160 = vmatprep.subr.mxu0 0.0
  %161 = vmatpush1.msra.mxu0 0.0
  %162 = vmatprep.subr.mxu0 0.0
  %163 = vmatpush1.msra.mxu0 0.0
  %164 = vmatprep.subr.mxu0 0.0
  %165 = vmatpush1.msra.mxu0 0.0
  %166 = vmatprep.subr.mxu0 0.0
  %167 = vmatpush1.msra.mxu0 0.0
  %168 = vmatprep.subr.mxu0 0.0
  %169 = vmatpush1.msra.mxu0 0.0
  %170 = vmatprep.subr.mxu0 0.0
  %171 = vmatpush1.msra.mxu0 0.0
  %172 = vmatprep.subr.mxu0 0.0
  %173 = vmatpush1.msra.mxu0 0.0
  %174 = vmatprep.subr.mxu0 0.0
  %175 = vmatpush1.msra.mxu0 0.0
  %176 = vmatprep.subr.mxu0 0.0
  %177 = vmatpush1.msra.mxu0 0.0
  %178 = vmatprep.subr.mxu0 0.0
  %179 = vmatpush1.msra.mxu0 0.0
  %180 = vmatprep.subr.mxu0 0.0
  %181 = vmatpush1.msra.mxu0 0.0
  %182 = vmatprep.subr.mxu0 0.0
  %183 = vmatpush1.msra.mxu0 0.0
  %184 = vmatprep.subr.mxu0 0.0
  %185 = vmatpush1.msra.mxu0 0.0
  %186 = vmatprep.mubr.f32.mxu0 0.0
  %187 = vmatmul.mubr.f32.gmra.mrb[0].mxu0 %v66
  %v188 = vpop.f32.mrb[0].mxu0
  %v189 = vadd.f32 %v115, %v188
  %v190 = vpop.f32.mrb[0].mxu0
  %v191 = vadd.f32 %v119, %v190
  %192 = vmatprep.mubr.f32.mxu0 0.0
  %193 = vmatmul.mubr.f32.gmra.mrb[0].mxu0 %v67
  %v194 = vpop.f32.mrb[0].mxu0
  %v195 = vadd.f32 %v115, %v194
  %v196 = vpop.f32.mrb[0].mxu0
  %v197 = vadd.f32 %v119, %v196
  %198 = vdwg.mxu0
  %199 = vst [vmem:[%s7] sm:$0xff] %v189
  %200 = vst [vmem:[%s7 + $0x8] sm:$0xff] %v191
  %201 = vst [vmem:[%s7 + $0x10] sm:$0xff] %v195
  %202 = vst [vmem:[%s7 + $0x18] sm:$0xff] %v197
  // Predicated region
  $region26: #{gnn_forward.5} parent=0 // pred_check
    _
  $region27: #{gnn_forward.5} parent=0 // pred_check_branch
    %204 = sbr.rel (0) target = $region29
  $region28: #{gnn_forward.5} parent=0 // pred_region
    _
  $region29: #{gnn_forward.5} parent=0 // pred_fallthru
    _
  // Predicated region
  $region30: #{gnn_forward.5} parent=0 // pred_check
    _
  $region31: #{gnn_forward.5} parent=0 // pred_check_branch
    %206 = sbr.rel (0) target = $region33
  $region32: #{gnn_forward.5} parent=0 // pred_region
    _
  $region33: #{gnn_forward.5} parent=0 // pred_fallthru
    _
  // Predicated region
  $region34: #{gnn_forward.5} parent=0 // pred_check
    _
  $region35: #{gnn_forward.5} parent=0 // pred_check_branch
    %208 = sbr.rel (0) target = $region37
  $region36: #{gnn_forward.5} parent=0 // pred_region
    _
  $region37: #{gnn_forward.5} parent=0 // pred_fallthru
    _
  // Predicated region
  $region38: #{gnn_forward.5} parent=0 // pred_check
    _
  $region39: #{gnn_forward.5} parent=0 // pred_check_branch
    %210 = sbr.rel (0) target = $region41
  $region40: #{gnn_forward.5} parent=0 // pred_region
    _
  $region41: #{gnn_forward.5} parent=0 // pred_fallthru
    _

// kernel: gnn_forward.4
$region0: #{gnn_forward.4}
  #allocation0 [shape = 'u32[]', space=smem, size = 0x4, offset = 0x4, fixed_abs, tag = 'smem constant byte address 0x4 - core index']
  #allocation1 [shape = 'u32[144,128]{1,0:T(1,128)}', space=vmem, size = 0x12000, scoped, tag = 'internal scratch']
  %s0 = inlined_call_operand.vmem [shape: f32[16,8], index: 0, kind: input, shape index: {}]
  %s1 = inlined_call_operand.vmem [shape: f32[8,128], index: 1, kind: input, shape index: {}]
  %s2 = inlined_call_operand.vmem [shape: f32[1,128], index: 2, kind: input, shape index: {}]
  %s3 = inlined_call_operand.vmem [shape: f32[16,128], index: 3, kind: output, shape index: {0}]
  %s4 = inlined_call_operand.vmem [shape: f32[1,2,128], index: 4, kind: output, shape index: {1}]
  %5 = xla_tuple %s3, %s4
  %s6 = sld [smem:[#allocation0]]
  $region30: #{gnn_forward.4} parent=0
    _
  %s8 = ssub.s32 1, %s6
  %s9 = scalar_select 0, %s8, %s6
  // Predicated region
  $region2: #{gnn_forward.4} parent=0 // pred_check
    _
  $region3: #{gnn_forward.4} parent=0 // pred_check_branch
    %11 = sbr.rel (0) target = $region5
  $region4: #{gnn_forward.4} parent=0 // pred_region
    _
  $region5: #{gnn_forward.4} parent=0 // pred_fallthru
    _
  // Predicated region
  $region6: #{gnn_forward.4} parent=0 // pred_check
    _
  $region7: #{gnn_forward.4} parent=0 // pred_check_branch
    %13 = sbr.rel (0) target = $region9
  $region8: #{gnn_forward.4} parent=0 // pred_region
    _
  $region9: #{gnn_forward.4} parent=0 // pred_fallthru
    _
  // Predicated region
  $region10: #{gnn_forward.4} parent=0 // pred_check
    _
  $region11: #{gnn_forward.4} parent=0 // pred_check_branch
    %15 = sbr.rel (0) target = $region13
  $region12: #{gnn_forward.4} parent=0 // pred_region
    _
  $region13: #{gnn_forward.4} parent=0 // pred_fallthru
    _
  %v16 = vld [vmem:[%s0] sm:$0xff]
  %v17 = vld [vmem:[%s0 + $0x8] sm:$0xff]
  %v18 = vld [vmem:[%s1] sm:$0xff]
  %v19 = vld [vmem:[%s2] sm:$0x1]
  %v21 = vlaneseq
  %v22 = vshrl.u32 %v21, 7
  %v23 = vsub.s32 0, %v22
  %v24 = vrot.slane %v19, %v23
  %vm26 = vcmask 64512
  %v28 = vsel %vm26, %v16, 0
  %v31 = vsel %vm26, %v17, 0
  %33 = vmatprep.subr.mxu0 0.0
  %34 = vmatpush1.msra.mxu0 %v18
  %35 = vmatprep.subr.mxu0 0.0
  %36 = vmatpush1.msra.mxu0 0.0
  %37 = vmatprep.subr.mxu0 0.0
  %38 = vmatpush1.msra.mxu0 0.0
  %39 = vmatprep.subr.mxu0 0.0
  %40 = vmatpush1.msra.mxu0 0.0
  %41 = vmatprep.subr.mxu0 0.0
  %42 = vmatpush1.msra.mxu0 0.0
  %43 = vmatprep.subr.mxu0 0.0
  %44 = vmatpush1.msra.mxu0 0.0
  %45 = vmatprep.subr.mxu0 0.0
  %46 = vmatpush1.msra.mxu0 0.0
  %47 = vmatprep.subr.mxu0 0.0
  %48 = vmatpush1.msra.mxu0 0.0
  %49 = vmatprep.subr.mxu0 0.0
  %50 = vmatpush1.msra.mxu0 0.0
  %51 = vmatprep.subr.mxu0 0.0
  %52 = vmatpush1.msra.mxu0 0.0
  %53 = vmatprep.subr.mxu0 0.0
  %54 = vmatpush1.msra.mxu0 0.0
  %55 = vmatprep.subr.mxu0 0.0
  %56 = vmatpush1.msra.mxu0 0.0
  %57 = vmatprep.subr.mxu0 0.0
  %58 = vmatpush1.msra.mxu0 0.0
  %59 = vmatprep.subr.mxu0 0.0
  %60 = vmatpush1.msra.mxu0 0.0
  %61 = vmatprep.subr.mxu0 0.0
  %62 = vmatpush1.msra.mxu0 0.0
  %63 = vmatprep.subr.mxu0 0.0
  %64 = vmatpush1.msra.mxu0 0.0
  %65 = vmatprep.subr.mxu0 0.0
  %66 = vmatpush1.msra.mxu0 0.0
  %67 = vmatprep.subr.mxu0 0.0
  %68 = vmatpush1.msra.mxu0 0.0
  %69 = vmatprep.subr.mxu0 0.0
  %70 = vmatpush1.msra.mxu0 0.0
  %71 = vmatprep.subr.mxu0 0.0
  %72 = vmatpush1.msra.mxu0 0.0
  %73 = vmatprep.subr.mxu0 0.0
  %74 = vmatpush1.msra.mxu0 0.0
  %75 = vmatprep.subr.mxu0 0.0
  %76 = vmatpush1.msra.mxu0 0.0
  %77 = vmatprep.subr.mxu0 0.0
  %78 = vmatpush1.msra.mxu0 0.0
  %79 = vmatprep.subr.mxu0 0.0
  %80 = vmatpush1.msra.mxu0 0.0
  %81 = vmatprep.subr.mxu0 0.0
  %82 = vmatpush1.msra.mxu0 0.0
  %83 = vmatprep.subr.mxu0 0.0
  %84 = vmatpush1.msra.mxu0 0.0
  %85 = vmatprep.subr.mxu0 0.0
  %86 = vmatpush1.msra.mxu0 0.0
  %87 = vmatprep.subr.mxu0 0.0
  %88 = vmatpush1.msra.mxu0 0.0
  %89 = vmatprep.subr.mxu0 0.0
  %90 = vmatpush1.msra.mxu0 0.0
  %91 = vmatprep.subr.mxu0 0.0
  %92 = vmatpush1.msra.mxu0 0.0
  %93 = vmatprep.subr.mxu0 0.0
  %94 = vmatpush1.msra.mxu0 0.0
  %95 = vmatprep.subr.mxu0 0.0
  %96 = vmatpush1.msra.mxu0 0.0
  %97 = vmatprep.mubr.f32.mxu0 0.0
  %98 = vmatmul.mubr.f32.gmra.mrb[0].mxu0 %v28
  %v99 = vpop.f32.mrb[0].mxu0
  %v100 = vadd.f32 %v24, %v99
  %v101 = vpop.f32.mrb[0].mxu0
  %102 = vmatprep.mubr.f32.mxu0 0.0
  %103 = vmatmul.mubr.f32.gmra.mrb[0].mxu0 %v31
  %v104 = vpop.f32.mrb[0].mxu0
  %v105 = vadd.f32 %v24, %v104
  %v106 = vpop.f32.mrb[0].mxu0
  %107 = vdwg.mxu0
  %108 = vst [vmem:[%s3] sm:$0xff] %v100
  %109 = vst [vmem:[%s3 + $0x8] sm:$0xff] %v105
  %v110 = vadd.f32 %v100, %v105
  %v111 = vrot.slane %v110, 4
  %v112 = vadd.f32 %v110, %v111
  %v113 = vrot.slane %v112, 2
  %v114 = vadd.f32 %v112, %v113
  %v115 = vrot.slane %v114, 1
  %v116 = vadd.f32 %v114, %v115
  %v117 = vmul.f32 %v100, %v100
  %v118 = vmul.f32 %v105, %v105
  %v119 = vadd.f32 %v117, %v118
  %v120 = vrot.slane %v119, 4
  %v121 = vadd.f32 %v119, %v120
  %v122 = vrot.slane %v121, 2
  %v123 = vadd.f32 %v121, %v122
  %v124 = vrot.slane %v123, 1
  %v125 = vadd.f32 %v123, %v124
  %vm126 = vcmask 1040384
  %v127 = vsel %vm126, %v116, %v125
  %128 = vst [vmem:[%s4] sm:$0x3] %v127
  // Predicated region
  $region14: #{gnn_forward.4} parent=0 // pred_check
    _
  $region15: #{gnn_forward.4} parent=0 // pred_check_branch
    %130 = sbr.rel (0) target = $region17
  $region16: #{gnn_forward.4} parent=0 // pred_region
    _
  $region17: #{gnn_forward.4} parent=0 // pred_fallthru
    _
  // Predicated region
  $region18: #{gnn_forward.4} parent=0 // pred_check
    _
  $region19: #{gnn_forward.4} parent=0 // pred_check_branch
    %132 = sbr.rel (0) target = $region21
  $region20: #{gnn_forward.4} parent=0 // pred_region
    _
  $region21: #{gnn_forward.4} parent=0 // pred_fallthru
    _
  // Predicated region
  $region22: #{gnn_forward.4} parent=0 // pred_check
    _
  $region23: #{gnn_forward.4} parent=0 // pred_check_branch
    %134 = sbr.rel (0) target = $region25
  $region24: #{gnn_forward.4} parent=0 // pred_region
    _
  $region25: #{gnn_forward.4} parent=0 // pred_fallthru
    _
  // Predicated region
  $region26: #{gnn_forward.4} parent=0 // pred_check
    _
  $region27: #{gnn_forward.4} parent=0 // pred_check_branch
    %136 = sbr.rel (0) target = $region29
  $region28: #{gnn_forward.4} parent=0 // pred_region
    _
  $region29: #{gnn_forward.4} parent=0 // pred_fallthru
    _

// kernel: gnn_forward.7
$region0: #{gnn_forward.7}
  #allocation0 [shape = 'u32[]', space=smem, size = 0x4, offset = 0x4, fixed_abs, tag = 'smem constant byte address 0x4 - core index']
  #allocation1 [shape = 'u32[144,128]{1,0:T(1,128)}', space=vmem, size = 0x12000, scoped, tag = 'internal scratch']
  %s0 = inlined_call_operand.vmem [shape: f32[16,128], index: 0, kind: input, shape index: {}]
  %s1 = inlined_call_operand.vmem [shape: f32[2,128], index: 1, kind: input, shape index: {}]
  %s2 = inlined_call_operand.vmem [shape: f32[1,128], index: 2, kind: input, shape index: {}]
  %s3 = inlined_call_operand.vmem [shape: f32[1,128], index: 3, kind: input, shape index: {}]
  %s4 = inlined_call_operand.vmem [shape: f32[128,128], index: 4, kind: input, shape index: {}]
  %s5 = inlined_call_operand.vmem [shape: f32[1,128], index: 5, kind: input, shape index: {}]
  %s6 = inlined_call_operand.vmem [shape: f32[16,256], index: 6, kind: input, shape index: {}]
  %s7 = inlined_call_operand.vmem [shape: f32[8,16], index: 7, kind: input, shape index: {}]
  %s8 = inlined_call_operand.vmem [shape: f32[16,128], index: 8, kind: output, shape index: {0}]
  %s9 = inlined_call_operand.vmem [shape: f32[16,128], index: 9, kind: output, shape index: {1}]
  %s10 = inlined_call_operand.vmem [shape: f32[1,8,128], index: 10, kind: output, shape index: {2}]
  %s11 = inlined_call_operand.vmem [shape: f32[1,8,128], index: 11, kind: output, shape index: {3}]
  %12 = xla_tuple %s8, %s9, %s10, %s11
  %s13 = sld [smem:[#allocation0]]
  $region104: #{gnn_forward.7} parent=0
    _
  %s15 = ssub.s32 1, %s13
  %s16 = scalar_select 0, %s15, %s13
  $region1: #{gnn_forward.7} parent=0
    #allocation2 [shape = 'u8[8192]{0}', space=vmem, size = 0x2000, scoped, tag = 'input window, operand 6, single buffered']
    // Predicated region
    $region2: #{gnn_forward.7} parent=1 // pred_check
      _
    $region3: #{gnn_forward.7} parent=1 // pred_check_branch
      %18 = sbr.rel (0) target = $region5
    $region4: #{gnn_forward.7} parent=1 // pred_region
      _
    $region5: #{gnn_forward.7} parent=1 // pred_fallthru
      _
    // Predicated region
    $region6: #{gnn_forward.7} parent=1 // pred_check
      _
    $region7: #{gnn_forward.7} parent=1 // pred_check_branch
      %20 = sbr.rel (0) target = $region9
    $region8: #{gnn_forward.7} parent=1 // pred_region
      _
    $region9: #{gnn_forward.7} parent=1 // pred_fallthru
      _
    // Predicated region
    $region10: #{gnn_forward.7} parent=1 // pred_check
      _
    $region11: #{gnn_forward.7} parent=1 // pred_check_branch
      %22 = sbr.rel (0) target = $region13
    $region12: #{gnn_forward.7} parent=1 // pred_region
      _
    $region13: #{gnn_forward.7} parent=1 // pred_fallthru
      _
    // Predicated region
    $region14: #{gnn_forward.7} parent=1 // pred_check
      _
    $region15: #{gnn_forward.7} parent=1 // pred_check_branch
      %24 = sbr.rel (0) target = $region17
    $region16: #{gnn_forward.7} parent=1 // pred_region
      _
    $region17: #{gnn_forward.7} parent=1 // pred_fallthru
      _
    // Predicated region
    $region18: #{gnn_forward.7} parent=1 // pred_check
      _
    $region19: #{gnn_forward.7} parent=1 // pred_check_branch
      %26 = sbr.rel (0) target = $region21
    $region20: #{gnn_forward.7} parent=1 // pred_region
      _
    $region21: #{gnn_forward.7} parent=1 // pred_fallthru
      _
    // Predicated region
    $region22: #{gnn_forward.7} parent=1 // pred_check
      _
    $region23: #{gnn_forward.7} parent=1 // pred_check_branch
      %28 = sbr.rel (0) target = $region25
    $region24: #{gnn_forward.7} parent=1 // pred_region
      _
    $region25: #{gnn_forward.7} parent=1 // pred_fallthru
      _
    // Predicated region
    $region26: #{gnn_forward.7} parent=1 // pred_check
      _
    $region27: #{gnn_forward.7} parent=1 // pred_check_branch
      %30 = sbr.rel (0) target = $region29
    $region28: #{gnn_forward.7} parent=1 // pred_region
      // Predicated region
      $region30: #{gnn_forward.7} parent=28 // pred_check
        _
      $region31: #{gnn_forward.7} parent=28 // pred_check_branch
        %32 = sbr.rel (0) target = $region33
      $region32: #{gnn_forward.7} parent=28 // pred_region
        // Predicated region
        $region34: #{gnn_forward.7} parent=32 // pred_check
          _
        $region35: #{gnn_forward.7} parent=32 // pred_check_branch
          %34 = sbr.rel (0) target = $region37
        $region36: #{gnn_forward.7} parent=32 // pred_region
          // Predicated region
          $region49: #{gnn_forward.7} parent=36 // pred_check
            _
          $region50: #{gnn_forward.7} parent=36 // pred_check_branch
            %51 = sbr.rel (0) target = $region52
          $region51: #{gnn_forward.7} parent=36 // pred_region
            loop: start=0, step=1, limit=1
            $region53: #{gnn_forward.7} parent=51 // loop_pre_header
              _
            $region54: #{gnn_forward.7} parent=51 // loop_header
              %s53 = sphi 0, %s57
              %p54 = scmp.ge.s32.totalorder %s53, 1
              %s58 = sphi %s6, %s6
              %s59 = sphi [#allocation2], [#allocation2]
            $region55: #{gnn_forward.7} parent=51 // loop_header_branch
              %56 = sbr.rel (%p54) target = $region59
            $region56: #{gnn_forward.7} parent=51 // loop_body
              %v60 = vld [vmem:[%s58] sm:$0xff]
              %61 = vst [vmem:[%s59] sm:$0xff] %v60
              %v62 = vld [vmem:[%s58 + $0x10] sm:$0xff]
              %63 = vst [vmem:[%s59 + $0x8] sm:$0xff] %v62
            $region57: #{gnn_forward.7} parent=51 // loop_footer
              %s57 = sadd.s32 1, %s53
            $region58: #{gnn_forward.7} parent=51 // loop_footer_branch
              %52 = sbr.rel target = $region54
            $region59: #{gnn_forward.7} parent=51 // loop_exit
              _
          $region52: #{gnn_forward.7} parent=36 // pred_fallthru
            _
          // Predicated region
          $region60: #{gnn_forward.7} parent=36 // pred_check
            _
          $region61: #{gnn_forward.7} parent=36 // pred_check_branch
            %65 = sbr.rel target = $region63
          $region62: #{gnn_forward.7} parent=36 // pred_region
            _
          $region63: #{gnn_forward.7} parent=36 // pred_fallthru
            _
        $region37: #{gnn_forward.7} parent=32 // pred_fallthru
          _
        // Predicated region
        $region38: #{gnn_forward.7} parent=32 // pred_check
          _
        $region39: #{gnn_forward.7} parent=32 // pred_check_branch
          %36 = sbr.rel target = $region41
        $region40: #{gnn_forward.7} parent=32 // pred_region
          loop: start=0, step=1, limit=1
          $region42: #{gnn_forward.7} parent=40 // loop_pre_header
            _
          $region43: #{gnn_forward.7} parent=40 // loop_header
            %s39 = sphi 0, %s43
            %p40 = scmp.ge.s32.totalorder %s39, 1
            %s44 = sphi %s6, %s6
            %s45 = sphi [#allocation2], [#allocation2]
          $region44: #{gnn_forward.7} parent=40 // loop_header_branch
            %42 = sbr.rel (%p40) target = $region48
          $region45: #{gnn_forward.7} parent=40 // loop_body
            %v46 = vld [vmem:[%s44] sm:$0xff]
            %47 = vst [vmem:[%s45] sm:$0xff] %v46
            %v48 = vld [vmem:[%s44 + $0x10] sm:$0xff]
            %49 = vst [vmem:[%s45 + $0x8] sm:$0xff] %v48
          $region46: #{gnn_forward.7} parent=40 // loop_footer
            %s43 = sadd.s32 1, %s39
          $region47: #{gnn_forward.7} parent=40 // loop_footer_branch
            %38 = sbr.rel target = $region43
          $region48: #{gnn_forward.7} parent=40 // loop_exit
            _
        $region41: #{gnn_forward.7} parent=32 // pred_fallthru
          _
      $region33: #{gnn_forward.7} parent=28 // pred_fallthru
        _
      %66 = vnop
    $region29: #{gnn_forward.7} parent=1 // pred_fallthru
      _
    // Predicated region
    $region64: #{gnn_forward.7} parent=1 // pred_check
      _
    $region65: #{gnn_forward.7} parent=1 // pred_check_branch
      %68 = sbr.rel (0) target = $region67
    $region66: #{gnn_forward.7} parent=1 // pred_region
      _
    $region67: #{gnn_forward.7} parent=1 // pred_fallthru
      _
    // Predicated region
    $region68: #{gnn_forward.7} parent=1 // pred_check
      _
    $region69: #{gnn_forward.7} parent=1 // pred_check_branch
      %70 = sbr.rel (0) target = $region71
    $region70: #{gnn_forward.7} parent=1 // pred_region
      _
    $region71: #{gnn_forward.7} parent=1 // pred_fallthru
      _
    %v71 = vld [vmem:[%s1] sm:$0x1]
    %v72 = vmul.f32 %v71, 0.0625
    %v73 = vld [vmem:[%s1 + $0x1] sm:$0x1]
    %v74 = vmul.f32 %v73, 0.0625
    %v75 = vmul.f32 %v72, %v72
    %v76 = vsub.f32 %v74, %v75
    %v77 = vmax.f32 %v76, 0.0
    %v78 = vld [vmem:[%s0] sm:$0xff]
    %v79 = vld [vmem:[%s0 + $0x8] sm:$0xff]
    %v80 = vlaneseq
    %v81 = vshrl.u32 %v80, 7
    %v82 = vsub.s32 0, %v81
    %v83 = vrot.slane %v72, %v82
    %v84 = vsub.f32 %v78, %v83
    %v85 = vsub.f32 %v79, %v83
    %v86 = vadd.f32 %v77, 1e-05
    %v87 = vrsqrt.pop %v86
    %v88 = vlaneseq
    %v89 = vshrl.u32 %v88, 7
    %v90 = vsub.s32 0, %v89
    %v91 = vrot.slane %v87, %v90
    %v92 = vmul.f32 %v84, %v91
    %v93 = vmul.f32 %v85, %v91
    %v94 = vld [vmem:[%s2] sm:$0x1]
    %v96 = vlaneseq
    %v97 = vshrl.u32 %v96, 7
    %v98 = vsub.s32 0, %v97
    %v99 = vrot.slane %v94, %v98
    %v101 = vmul.f32 %v92, %v99
    %v102 = vmul.f32 %v93, %v99
    %v103 = vld [vmem:[%s3] sm:$0x1]
    %v105 = vlaneseq
    %v106 = vshrl.u32 %v105, 7
    %v107 = vsub.s32 0, %v106
    %v108 = vrot.slane %v103, %v107
    %v110 = vadd.f32 %v101, %v108
    %v111 = vadd.f32 %v102, %v108
    %v112 = vmax.f32 %v110, 0.0
    %v113 = vmax.f32 %v111, 0.0
    %114 = vst [vmem:[%s9] sm:$0xff] %v112
    %115 = vst [vmem:[%s9 + $0x8] sm:$0xff] %v113
    %v116 = vld [vmem:[%s4] sm:$0xff]
    %v117 = vld [vmem:[%s4 + $0x8] sm:$0xff]
    %v118 = vld [vmem:[%s4 + $0x10] sm:$0xff]
    %v119 = vld [vmem:[%s4 + $0x18] sm:$0xff]
    %v120 = vld [vmem:[%s4 + $0x20] sm:$0xff]
    %v121 = vld [vmem:[%s4 + $0x28] sm:$0xff]
    %v122 = vld [vmem:[%s4 + $0x30] sm:$0xff]
    %v123 = vld [vmem:[%s4 + $0x38] sm:$0xff]
    %v124 = vld [vmem:[%s4 + $0x40] sm:$0xff]
    %v125 = vld [vmem:[%s4 + $0x48] sm:$0xff]
    %v126 = vld [vmem:[%s4 + $0x50] sm:$0xff]
    %v127 = vld [vmem:[%s4 + $0x58] sm:$0xff]
    %v128 = vld [vmem:[%s4 + $0x60] sm:$0xff]
    %v129 = vld [vmem:[%s4 + $0x68] sm:$0xff]
    %v130 = vld [vmem:[%s4 + $0x70] sm:$0xff]
    %v131 = vld [vmem:[%s4 + $0x78] sm:$0xff]
    %v132 = vld [vmem:[%s5] sm:$0x1]
    %v134 = vlaneseq
    %v135 = vshrl.u32 %v134, 7
    %v136 = vsub.s32 0, %v135
    %v137 = vrot.slane %v132, %v136
    %139 = vmatprep.subr.mxu0 0.0
    %140 = vmatpush1.msra.mxu0 %v116
    %141 = vmatprep.subr.mxu0 0.0
    %142 = vmatpush1.msra.mxu0 %v117
    %143 = vmatprep.subr.mxu0 0.0
    %144 = vmatpush1.msra.mxu0 %v118
    %145 = vmatprep.subr.mxu0 0.0
    %146 = vmatpush1.msra.mxu0 %v119
    %147 = vmatprep.subr.mxu0 0.0
    %148 = vmatpush1.msra.mxu0 %v120
    %149 = vmatprep.subr.mxu0 0.0
    %150 = vmatpush1.msra.mxu0 %v121
    %151 = vmatprep.subr.mxu0 0.0
    %152 = vmatpush1.msra.mxu0 %v122
    %153 = vmatprep.subr.mxu0 0.0
    %154 = vmatpush1.msra.mxu0 %v123
    %155 = vmatprep.subr.mxu0 0.0
    %156 = vmatpush1.msra.mxu0 %v124
    %157 = vmatprep.subr.mxu0 0.0
    %158 = vmatpush1.msra.mxu0 %v125
    %159 = vmatprep.subr.mxu0 0.0
    %160 = vmatpush1.msra.mxu0 %v126
    %161 = vmatprep.subr.mxu0 0.0
    %162 = vmatpush1.msra.mxu0 %v127
    %163 = vmatprep.subr.mxu0 0.0
    %164 = vmatpush1.msra.mxu0 %v128
    %165 = vmatprep.subr.mxu0 0.0
    %166 = vmatpush1.msra.mxu0 %v129
    %167 = vmatprep.subr.mxu0 0.0
    %168 = vmatpush1.msra.mxu0 %v130
    %169 = vmatprep.subr.mxu0 0.0
    %170 = vmatpush1.msra.mxu0 %v131
    %171 = vmatprep.subr.mxu0 0.0
    %172 = vmatpush1.msra.mxu0 0.0
    %173 = vmatprep.subr.mxu0 0.0
    %174 = vmatpush1.msra.mxu0 0.0
    %175 = vmatprep.subr.mxu0 0.0
    %176 = vmatpush1.msra.mxu0 0.0
    %177 = vmatprep.subr.mxu0 0.0
    %178 = vmatpush1.msra.mxu0 0.0
    %179 = vmatprep.subr.mxu0 0.0
    %180 = vmatpush1.msra.mxu0 0.0
    %181 = vmatprep.subr.mxu0 0.0
    %182 = vmatpush1.msra.mxu0 0.0
    %183 = vmatprep.subr.mxu0 0.0
    %184 = vmatpush1.msra.mxu0 0.0
    %185 = vmatprep.subr.mxu0 0.0
    %186 = vmatpush1.msra.mxu0 0.0
    %187 = vmatprep.subr.mxu0 0.0
    %188 = vmatpush1.msra.mxu0 0.0
    %189 = vmatprep.subr.mxu0 0.0
    %190 = vmatpush1.msra.mxu0 0.0
    %191 = vmatprep.subr.mxu0 0.0
    %192 = vmatpush1.msra.mxu0 0.0
    %193 = vmatprep.subr.mxu0 0.0
    %194 = vmatpush1.msra.mxu0 0.0
    %195 = vmatprep.subr.mxu0 0.0
    %196 = vmatpush1.msra.mxu0 0.0
    %197 = vmatprep.subr.mxu0 0.0
    %198 = vmatpush1.msra.mxu0 0.0
    %199 = vmatprep.subr.mxu0 0.0
    %200 = vmatpush1.msra.mxu0 0.0
    %201 = vmatprep.subr.mxu0 0.0
    %202 = vmatpush1.msra.mxu0 0.0
    %203 = vmatprep.mubr.f32.mxu0 0.0
    %204 = vmatmul.mubr.f32.gmra.mrb[0].mxu0 %v112
    %v205 = vpop.f32.mrb[0].mxu0
    %v206 = vadd.f32 %v137, %v205
    %v207 = vpop.f32.mrb[0].mxu0
    %208 = vmatprep.mubr.f32.mxu0 0.0
    %209 = vmatmul.mubr.f32.gmra.mrb[0].mxu0 %v113
    %v210 = vpop.f32.mrb[0].mxu0
    %v211 = vadd.f32 %v137, %v210
    %v212 = vpop.f32.mrb[0].mxu0
    %213 = vdwg.mxu0
    %v214 = vld [vmem:[#allocation2] sm:$0xff]
    %v215 = vld [vmem:[#allocation2 + $0x8] sm:$0xff]
    %v216 = vadd.f32 %v214, %v206
    %v217 = vadd.f32 %v215, %v211
    %218 = vst [vmem:[%s8] sm:$0xff] %v216
    %219 = vst [vmem:[%s8 + $0x8] sm:$0xff] %v217
    %v220 = vld [vmem:[%s7] sm:$0xff]
    %v221 = vsub.f32 %v220, 1.0
    %v222 = vmul.f32 %v221, 1e+30
    %v223 = vlaneseq
    %v224 = vshrl.u32 %v223, 7
    %v225 = vsub.s32 0, %v224
    %v226 = vrot.slane %v222, %v225
    %228 = vbcast.lane.b32.xlu0 %v226, 256
    %v229 = vpop.permute.xlu0 %228
    %s231 = sor.u32 256, 8
    %232 = vbcast.lane.b32.xlu0 %v226, %s231
    %v233 = vpop.permute.xlu0 %232
    %v234 = vlaneseq
    %v235 = vshrl.u32 %v234, 7
    %v236 = vsub.s32 1, %v235
    %v237 = vrot.slane %v222, %v236
    %239 = vbcast.lane.b32.xlu0 %v237, 256
    %v240 = vpop.permute.xlu0 %239
    %s242 = sor.u32 256, 8
    %243 = vbcast.lane.b32.xlu0 %v237, %s242
    %v244 = vpop.permute.xlu0 %243
    %v245 = vlaneseq
    %v246 = vshrl.u32 %v245, 7
    %v247 = vsub.s32 2, %v246
    %v248 = vrot.slane %v222, %v247
    %250 = vbcast.lane.b32.xlu0 %v248, 256
    %v251 = vpop.permute.xlu0 %250
    %s253 = sor.u32 256, 8
    %254 = vbcast.lane.b32.xlu0 %v248, %s253
    %v255 = vpop.permute.xlu0 %254
    %v256 = vlaneseq
    %v257 = vshrl.u32 %v256, 7
    %v258 = vsub.s32 3, %v257
    %v259 = vrot.slane %v222, %v258
    %261 = vbcast.lane.b32.xlu0 %v259, 256
    %v262 = vpop.permute.xlu0 %261
    %s264 = sor.u32 256, 8
    %265 = vbcast.lane.b32.xlu0 %v259, %s264
    %v266 = vpop.permute.xlu0 %265
    %v267 = vlaneseq
    %v268 = vshrl.u32 %v267, 7
    %v269 = vsub.s32 4, %v268
    %v270 = vrot.slane %v222, %v269
    %272 = vbcast.lane.b32.xlu0 %v270, 256
    %v273 = vpop.permute.xlu0 %272
    %s275 = sor.u32 256, 8
    %276 = vbcast.lane.b32.xlu0 %v270, %s275
    %v277 = vpop.permute.xlu0 %276
    %v278 = vlaneseq
    %v279 = vshrl.u32 %v278, 7
    %v280 = vsub.s32 5, %v279
    %v281 = vrot.slane %v222, %v280
    %283 = vbcast.lane.b32.xlu0 %v281, 256
    %v284 = vpop.permute.xlu0 %283
    %s286 = sor.u32 256, 8
    %287 = vbcast.lane.b32.xlu0 %v281, %s286
    %v288 = vpop.permute.xlu0 %287
    %v289 = vlaneseq
    %v290 = vshrl.u32 %v289, 7
    %v291 = vsub.s32 6, %v290
    %v292 = vrot.slane %v222, %v291
    %294 = vbcast.lane.b32.xlu0 %v292, 256
    %v295 = vpop.permute.xlu0 %294
    %s297 = sor.u32 256, 8
    %298 = vbcast.lane.b32.xlu0 %v292, %s297
    %v299 = vpop.permute.xlu0 %298
    %v300 = vlaneseq
    %v301 = vshrl.u32 %v300, 7
    %v302 = vsub.s32 7, %v301
    %v303 = vrot.slane %v222, %v302
    %305 = vbcast.lane.b32.xlu0 %v303, 256
    %v306 = vpop.permute.xlu0 %305
    %s308 = sor.u32 256, 8
    %309 = vbcast.lane.b32.xlu0 %v303, %s308
    %v310 = vpop.permute.xlu0 %309
    %v311 = vadd.f32 %v214, %v229
    %v312 = vadd.f32 %v215, %v233
    %v313 = vadd.f32 %v214, %v240
    %v314 = vadd.f32 %v215, %v244
    %v315 = vadd.f32 %v214, %v251
    %v316 = vadd.f32 %v215, %v255
    %v317 = vadd.f32 %v214, %v262
    %v318 = vadd.f32 %v215, %v266
    %v319 = vadd.f32 %v214, %v273
    %v320 = vadd.f32 %v215, %v277
    %v321 = vadd.f32 %v214, %v284
    %v322 = vadd.f32 %v215, %v288
    %v323 = vadd.f32 %v214, %v295
    %v324 = vadd.f32 %v215, %v299
    %v325 = vadd.f32 %v214, %v306
    %v326 = vadd.f32 %v215, %v310
    %v327 = vmax.f32 %v311, %v312
    %v328 = vrot.slane %v327, 4
    %v329 = vmax.f32 %v327, %v328
    %v330 = vrot.slane %v329, 2
    %v331 = vmax.f32 %v329, %v330
    %v332 = vrot.slane %v331, 1
    %v333 = vmax.f32 %v331, %v332
    %v334 = vmax.f32 %v313, %v314
    %v335 = vrot.slane %v334, 4
    %v336 = vmax.f32 %v334, %v335
    %v337 = vrot.slane %v336, 2
    %v338 = vmax.f32 %v336, %v337
    %v339 = vrot.slane %v338, 1
    %v340 = vmax.f32 %v338, %v339
    %v341 = vmax.f32 %v315, %v316
    %v342 = vrot.slane %v341, 4
    %v343 = vmax.f32 %v341, %v342
    %v344 = vrot.slane %v343, 2
    %v345 = vmax.f32 %v343, %v344
    %v346 = vrot.slane %v345, 1
    %v347 = vmax.f32 %v345, %v346
    %v348 = vmax.f32 %v317, %v318
    %v349 = vrot.slane %v348, 4
    %v350 = vmax.f32 %v348, %v349
    %v351 = vrot.slane %v350, 2
    %v352 = vmax.f32 %v350, %v351
    %v353 = vrot.slane %v352, 1
    %v354 = vmax.f32 %v352, %v353
    %v355 = vmax.f32 %v319, %v320
    %v356 = vrot.slane %v355, 4
    %v357 = vmax.f32 %v355, %v356
    %v358 = vrot.slane %v357, 2
    %v359 = vmax.f32 %v357, %v358
    %v360 = vrot.slane %v359, 1
    %v361 = vmax.f32 %v359, %v360
    %v362 = vmax.f32 %v321, %v322
    %v363 = vrot.slane %v362, 4
    %v364 = vmax.f32 %v362, %v363
    %v365 = vrot.slane %v364, 2
    %v366 = vmax.f32 %v364, %v365
    %v367 = vrot.slane %v366, 1
    %v368 = vmax.f32 %v366, %v367
    %v369 = vmax.f32 %v323, %v324
    %v370 = vrot.slane %v369, 4
    %v371 = vmax.f32 %v369, %v370
    %v372 = vrot.slane %v371, 2
    %v373 = vmax.f32 %v371, %v372
    %v374 = vrot.slane %v373, 1
    %v375 = vmax.f32 %v373, %v374
    %v376 = vmax.f32 %v325, %v326
    %v377 = vrot.slane %v376, 4
    %v378 = vmax.f32 %v376, %v377
    %v379 = vrot.slane %v378, 2
    %v380 = vmax.f32 %v378, %v379
    %v381 = vrot.slane %v380, 1
    %v382 = vmax.f32 %v380, %v381
    %vm391 = vcmask 1041409
    %v392 = vsel %vm391, %v340, %v333
    %vm393 = vcmask 1042434
    %v394 = vsel %vm393, %v347, %v392
    %vm395 = vcmask 1043459
    %v396 = vsel %vm395, %v354, %v394
    %vm397 = vcmask 1044484
    %v398 = vsel %vm397, %v361, %v396
    %vm399 = vcmask 1045509
    %v400 = vsel %vm399, %v368, %v398
    %vm401 = vcmask 1046534
    %v402 = vsel %vm401, %v375, %v400
    %vm403 = vcmask 1047559
    %v404 = vsel %vm403, %v382, %v402
    %406 = vst [vmem:[%s10] sm:$0xff] %v404
    %v407 = vadd.f32 %v206, %v229
    %v408 = vadd.f32 %v211, %v233
    %v409 = vadd.f32 %v206, %v240
    %v410 = vadd.f32 %v211, %v244
    %v411 = vadd.f32 %v206, %v251
    %v412 = vadd.f32 %v211, %v255
    %v413 = vadd.f32 %v206, %v262
    %v414 = vadd.f32 %v211, %v266
    %v415 = vadd.f32 %v206, %v273
    %v416 = vadd.f32 %v211, %v277
    %v417 = vadd.f32 %v206, %v284
    %v418 = vadd.f32 %v211, %v288
    %v419 = vadd.f32 %v206, %v295
    %v420 = vadd.f32 %v211, %v299
    %v421 = vadd.f32 %v206, %v306
    %v422 = vadd.f32 %v211, %v310
    %v423 = vmax.f32 %v407, %v408
    %v424 = vrot.slane %v423, 4
    %v425 = vmax.f32 %v423, %v424
    %v426 = vrot.slane %v425, 2
    %v427 = vmax.f32 %v425, %v426
    %v428 = vrot.slane %v427, 1
    %v429 = vmax.f32 %v427, %v428
    %v430 = vmax.f32 %v409, %v410
    %v431 = vrot.slane %v430, 4
    %v432 = vmax.f32 %v430, %v431
    %v433 = vrot.slane %v432, 2
    %v434 = vmax.f32 %v432, %v433
    %v435 = vrot.slane %v434, 1
    %v436 = vmax.f32 %v434, %v435
    %v437 = vmax.f32 %v411, %v412
    %v438 = vrot.slane %v437, 4
    %v439 = vmax.f32 %v437, %v438
    %v440 = vrot.slane %v439, 2
    %v441 = vmax.f32 %v439, %v440
    %v442 = vrot.slane %v441, 1
    %v443 = vmax.f32 %v441, %v442
    %v444 = vmax.f32 %v413, %v414
    %v445 = vrot.slane %v444, 4
    %v446 = vmax.f32 %v444, %v445
    %v447 = vrot.slane %v446, 2
    %v448 = vmax.f32 %v446, %v447
    %v449 = vrot.slane %v448, 1
    %v450 = vmax.f32 %v448, %v449
    %v451 = vmax.f32 %v415, %v416
    %v452 = vrot.slane %v451, 4
    %v453 = vmax.f32 %v451, %v452
    %v454 = vrot.slane %v453, 2
    %v455 = vmax.f32 %v453, %v454
    %v456 = vrot.slane %v455, 1
    %v457 = vmax.f32 %v455, %v456
    %v458 = vmax.f32 %v417, %v418
    %v459 = vrot.slane %v458, 4
    %v460 = vmax.f32 %v458, %v459
    %v461 = vrot.slane %v460, 2
    %v462 = vmax.f32 %v460, %v461
    %v463 = vrot.slane %v462, 1
    %v464 = vmax.f32 %v462, %v463
    %v465 = vmax.f32 %v419, %v420
    %v466 = vrot.slane %v465, 4
    %v467 = vmax.f32 %v465, %v466
    %v468 = vrot.slane %v467, 2
    %v469 = vmax.f32 %v467, %v468
    %v470 = vrot.slane %v469, 1
    %v471 = vmax.f32 %v469, %v470
    %v472 = vmax.f32 %v421, %v422
    %v473 = vrot.slane %v472, 4
    %v474 = vmax.f32 %v472, %v473
    %v475 = vrot.slane %v474, 2
    %v476 = vmax.f32 %v474, %v475
    %v477 = vrot.slane %v476, 1
    %v478 = vmax.f32 %v476, %v477
    %v487 = vsel %vm391, %v436, %v429
    %v488 = vsel %vm393, %v443, %v487
    %v489 = vsel %vm395, %v450, %v488
    %v490 = vsel %vm397, %v457, %v489
    %v491 = vsel %vm399, %v464, %v490
    %v492 = vsel %vm401, %v471, %v491
    %v493 = vsel %vm403, %v478, %v492
    %495 = vst [vmem:[%s11] sm:$0xff] %v493
    // Predicated region
    $region72: #{gnn_forward.7} parent=1 // pred_check
      _
    $region73: #{gnn_forward.7} parent=1 // pred_check_branch
      %497 = sbr.rel (0) target = $region75
    $region74: #{gnn_forward.7} parent=1 // pred_region
      _
    $region75: #{gnn_forward.7} parent=1 // pred_fallthru
      _
    // Predicated region
    $region76: #{gnn_forward.7} parent=1 // pred_check
      _
    $region77: #{gnn_forward.7} parent=1 // pred_check_branch
      %499 = sbr.rel (0) target = $region79
    $region78: #{gnn_forward.7} parent=1 // pred_region
      _
    $region79: #{gnn_forward.7} parent=1 // pred_fallthru
      _
    // Predicated region
    $region80: #{gnn_forward.7} parent=1 // pred_check
      _
    $region81: #{gnn_forward.7} parent=1 // pred_check_branch
      %501 = sbr.rel (0) target = $region83
    $region82: #{gnn_forward.7} parent=1 // pred_region
      _
    $region83: #{gnn_forward.7} parent=1 // pred_fallthru
      _
    // Predicated region
    $region84: #{gnn_forward.7} parent=1 // pred_check
      _
    $region85: #{gnn_forward.7} parent=1 // pred_check_branch
      %503 = sbr.rel (0) target = $region87
    $region86: #{gnn_forward.7} parent=1 // pred_region
      _
    $region87: #{gnn_forward.7} parent=1 // pred_fallthru
      _
    // Predicated region
    $region88: #{gnn_forward.7} parent=1 // pred_check
      _
    $region89: #{gnn_forward.7} parent=1 // pred_check_branch
      %505 = sbr.rel (0) target = $region91
    $region90: #{gnn_forward.7} parent=1 // pred_region
      _
    $region91: #{gnn_forward.7} parent=1 // pred_fallthru
      _
    // Predicated region
    $region92: #{gnn_forward.7} parent=1 // pred_check
      _
    $region93: #{gnn_forward.7} parent=1 // pred_check_branch
      %507 = sbr.rel (0) target = $region95
    $region94: #{gnn_forward.7} parent=1 // pred_region
      _
    $region95: #{gnn_forward.7} parent=1 // pred_fallthru
      _
    // Predicated region
    $region96: #{gnn_forward.7} parent=1 // pred_check
      _
    $region97: #{gnn_forward.7} parent=1 // pred_check_branch
      %509 = sbr.rel (0) target = $region99
    $region98: #{gnn_forward.7} parent=1 // pred_region
      _
    $region99: #{gnn_forward.7} parent=1 // pred_fallthru
      _
    // Predicated region
    $region100: #{gnn_forward.7} parent=1 // pred_check
      _
    $region101: #{gnn_forward.7} parent=1 // pred_check_branch
      %511 = sbr.rel (0) target = $region103
    $region102: #{gnn_forward.7} parent=1 // pred_region
      _
    $region103: #{gnn_forward.7} parent=1 // pred_fallthru
      _

</llo_original>
